<compile_context>
chip_gen: v6e
topology: v6e:2x2x1
jax: 0.10.0
libtpu: 0.0.40
codegen_flags: <defaults>
</compile_context>

<pallas_src>
import jax
import jax.numpy as jnp
import numpy as np
from jax.experimental import pallas as pl
from jax.experimental.pallas import tpu as pltpu

# ---------------- model constants (Dims / Tokens / Embeddings of the repo) ----------------
EMB          = 8                         # Dims.EMBEDDING_SIZE (30 * 8 = 240 = mlp input)
NUM_POS      = 30                        # 6 guesses x 5 letters
TOKENS_EXACT = 3
RESULT_VOCAB = TOKENS_EXACT + 1          # 4, padding_idx = 0
LETTER_VOCAB = 28                        # padding_idx = 0
COL_VOCAB    = 5
COMB_VOCAB   = RESULT_VOCAB + LETTER_VOCAB   # 32 one-hot slots per position
KDIM         = NUM_POS * COMB_VOCAB      # 960
FEAT         = NUM_POS * EMB             # 240
TOK_LANES    = 64                        # 60 packed tokens zero-padded to a clean lane count
HIDDEN       = 256
ACTION_SPACE = 256                       # config.action_space (test value)
VALUE_LANES  = 128                       # lane-dense value head (col 0 is the real output)
EMB_RESULT   = 0                         # Embeddings.RESULT
EMB_LETTER   = 1                         # Embeddings.LETTER
NEG_SLOPE    = 0.01                      # F.leaky_relu default


def _round_up(x, m):
    return ((x + m - 1) // m) * m


def _leaky(x):
    return jnp.where(x >= 0, x, NEG_SLOPE * x)


def _elu(x):                              # torch.nn.ELU(alpha=1.0)
    return jnp.where(x > 0, x, jnp.exp(jnp.minimum(x, 0.0)) - 1.0)


# ------------------------------------- Pallas kernel --------------------------------------
def zero_policy_kernel(tok_ref, ec_ref, tgt_ref,
                       w1_ref, b1_ref, w2_ref, b2_ref, w3_ref, b3_ref, w4_ref, b4_ref,
                       wa1_ref, ba1_ref, wa2_ref, ba2_ref, wv_ref, bv_ref,
                       probs_ref, logp_ref, value_ref):
    # ---- Preprocess (3 embedding gathers + sum), fused into layer 1 ----
    # Expand packed tokens (res lanes 0..29, letters 30..59, zero pad to 64) so each one-hot
    # slot sees its token value, via an exact 0/1 bf16 MXU matmul. NOTE: the float equality
    # below is exact only because tokens are small ints (< 32) and ec is exactly 0/1 -- both
    # representable without rounding in bf16; do not lower this matmul to fp8/approx paths.
    tok = tok_ref[...].astype(jnp.bfloat16)                           # (tile, 64)
    tok_exp = jnp.dot(tok, ec_ref[...],
                      preferred_element_type=jnp.float32)             # (tile, 960)
    one_hot = (tok_exp == tgt_ref[...]).astype(jnp.bfloat16)          # <=2 hot slots / position

    def dense(x, w_ref, b_ref):
        # Native 1-pass bf16 MXU matmul, f32 accumulate; elementwise math stays f32.
        return jnp.dot(x.astype(jnp.bfloat16), w_ref[...],
                       preferred_element_type=jnp.float32) + b_ref[...]

    # ---- output_layer = mlp(240, [256,256,256], 256): 3x (Linear + ELU) + Linear ----
    # w1_ref already carries tcomb @ w1; b1_ref carries b1 + col_emb-contribution @ w1.
    h = _elu(jnp.dot(one_hot, w1_ref[...],
                     preferred_element_type=jnp.float32) + b1_ref[...])
    h = _elu(dense(h, w2_ref, b2_ref))
    h = _elu(dense(h, w3_ref, b3_ref))
    x = dense(h, w4_ref, b4_ref)                                      # Identity output act.

    # ---- action head: fc_action2(leaky_relu(fc_action1(x))) -> per-row softmax ----
    act = dense(_leaky(dense(x, wa1_ref, ba1_ref)), wa2_ref, ba2_ref)
    z = act - jnp.max(act, axis=-1, keepdims=True)
    ez = jnp.exp(z)
    denom = jnp.sum(ez, axis=-1, keepdims=True)                       # (tile, 1)
    inv = 1.0 / denom                                                 # exact column reciprocal
    probs_ref[...] = ez * inv                                         # Categorical(probs).probs
    logp_ref[...] = z - jnp.log(denom)                                # log_softmax(m.logits)

    # ---- value head (lane-dense: cols 1.. are zero padding, sliced off in the wrapper) ----
    value_ref[...] = dense(x, wv_ref, bv_ref)


# ---------------------------------------- wrapper ----------------------------------------
def zero_policy_forward(state, params, sample_key):
    B = state.shape[0]
    assert state.ndim == 4 and state.shape[1:] == (6, 5, 2)

    # packed tokens: lanes 0..29 = result, 30..59 = letter, 60..63 = zero pad
    res = state[..., EMB_RESULT].reshape(B, NUM_POS).astype(jnp.int32)
    let = state[..., EMB_LETTER].reshape(B, NUM_POS).astype(jnp.int32)
    tok = jnp.concatenate([res, let], axis=1)                          # (B, 60)

    # Row tiling: large MXU-friendly tiles (<=512), but aim for >=2 grid steps so
    # dimension_semantics=("parallel",) can shard across both TensorCores on v7x.
    b8 = _round_up(B, 8)
    tile = min(512, max(8, _round_up(b8 // 2, 8))) if b8 > 8 else b8
    b_pad = _round_up(b8, tile)
    tok = jnp.pad(tok, ((0, b_pad - B), (0, TOK_LANES - 2 * NUM_POS)))  # (b_pad, 64)

    # ---- host-side constants (fetched once, VMEM-resident across all grid steps) ----
    hi = jax.lax.Precision.HIGHEST
    comb = jnp.concatenate([params["result_emb"], params["letter_emb"]], axis=0)   # (32, 8)
    # layer-1 weights with the block-diagonal embedding table folded in:
    #   W1'[p*32+v, :] = comb[v] @ w1[p*8:(p+1)*8, :]
    w1_pos = params["w1"].reshape(NUM_POS, EMB, HIDDEN)
    w1p = jnp.einsum("ve,pef->pvf", comb, w1_pos, precision=hi).reshape(KDIM, HIDDEN)
    # constant column-embedding contribution (col index == position % 5), folded into b1:
    col_vec = params["col_emb"][np.arange(NUM_POS) % COL_VOCAB].reshape(1, FEAT)
    b1p = params["b1"] + jnp.dot(col_vec, params["w1"], precision=hi)               # (1, 256)

    # token -> one-hot-slot expansion matrix (exact 0/1, bf16): (64, 960)
    k = np.arange(KDIM)
    seg, off = k // COMB_VOCAB, k % COMB_VOCAB
    ec_np = np.zeros((TOK_LANES, KDIM), np.float32)
    ec_np[seg, k] = (off < RESULT_VOCAB).astype(np.float32)
    ec_np[NUM_POS + seg, k] = (off >= RESULT_VOCAB).astype(np.float32)
    ec = jnp.asarray(ec_np, dtype=jnp.bfloat16)
    # per-slot target token value (pure function of lane index): (1, 960) f32
    target = jnp.asarray(
        np.where(off < RESULT_VOCAB, off, off - RESULT_VOCAB).astype(np.float32)[None, :])

    # lane-dense value head weights
    wv_pad = jnp.zeros((HIDDEN, VALUE_LANES), jnp.float32).at[:, 0].set(params["wv"][:, 0])
    bv_pad = jnp.zeros((1, VALUE_LANES), jnp.float32).at[0, 0].set(params["bv"][0, 0])

    bf = lambda w: w.astype(jnp.bfloat16)
    weights = [bf(w1p), b1p,
               bf(params["w2"]), params["b2"], bf(params["w3"]), params["b3"],
               bf(params["w4"]), params["b4"],
               bf(params["wa1"]), params["ba1"], bf(params["wa2"]), params["ba2"],
               bf(wv_pad), bv_pad]

    row_spec = lambda n: pl.BlockSpec((tile, n), lambda i: (i, 0))
    res_spec = lambda a: pl.BlockSpec(a.shape, lambda i: (0, 0))       # resident across grid

    probs, logp, value = pl.pallas_call(
        zero_policy_kernel,
        grid=(b_pad // tile,),
        in_specs=[row_spec(TOK_LANES), res_spec(ec), res_spec(target)]
                 + [res_spec(w) for w in weights],
        out_specs=(row_spec(ACTION_SPACE), row_spec(ACTION_SPACE), row_spec(VALUE_LANES)),
        out_shape=(jax.ShapeDtypeStruct((b_pad, ACTION_SPACE), jnp.float32),
                   jax.ShapeDtypeStruct((b_pad, ACTION_SPACE), jnp.float32),
                   jax.ShapeDtypeStruct((b_pad, VALUE_LANES), jnp.float32)),
        compiler_params=pltpu.CompilerParams(dimension_semantics=("parallel",)),
    )(tok, ec, target, *weights)

    probs, logp, value = probs[:B], logp[:B], value[:B, :1]
    # TODO(synk): Categorical.sample() matches in distribution only; torch.manual_seed(1234)
    # RNG stream cannot be reproduced with jax.random.
    action = jax.random.categorical(sample_key, logp, axis=-1)
    return action, logp, probs, value


# ------------------------------ deterministic parameter init ------------------------------
def init_params(key):
    ks = jax.random.split(key, 17)
    result_emb = jax.random.normal(ks[0], (RESULT_VOCAB, EMB), jnp.float32).at[0].set(0.0)
    letter_emb = jax.random.normal(ks[1], (LETTER_VOCAB, EMB), jnp.float32).at[0].set(0.0)
    col_emb = jax.random.normal(ks[2], (COL_VOCAB, EMB), jnp.float32)

    def linear(kw, kb, fan_in, fan_out):
        bound = 1.0 / np.sqrt(fan_in)
        w = jax.random.uniform(kw, (fan_in, fan_out), jnp.float32, -bound, bound)
        b = jax.random.uniform(kb, (1, fan_out), jnp.float32, -bound, bound)
        return w, b

    w1, b1 = linear(ks[3], ks[4], FEAT, HIDDEN)
    w2, b2 = linear(ks[5], ks[6], HIDDEN, HIDDEN)
    w3, b3 = linear(ks[7], ks[8], HIDDEN, HIDDEN)
    w4, b4 = linear(ks[9], ks[10], HIDDEN, HIDDEN)
    wa1, ba1 = linear(ks[11], ks[12], HIDDEN, HIDDEN)
    wa2, ba2 = linear(ks[13], ks[14], HIDDEN, ACTION_SPACE)
    wv, bv = linear(ks[15], ks[16], HIDDEN, 1)
    # TODO(synk): row_emb / positional_emb (Preprocess) and advantage_output are never used
    # in ZeroPolicy.forward, so they are not materialized here.
    return dict(result_emb=result_emb, letter_emb=letter_emb, col_emb=col_emb,
                w1=w1, b1=b1, w2=w2, b2=b2, w3=w3, b3=b3, w4=w4, b4=b4,
                wa1=wa1, ba1=ba1, wa2=wa2, ba2=ba2, wv=wv, bv=bv)


# -------------------------------- pure-JAX reference forward ------------------------------
def reference_forward(state, params):
    B = state.shape[0]
    hi = jax.lax.Precision.HIGHEST
    mm = lambda a, b: jnp.dot(a, b, precision=hi)
    res = params["result_emb"][state[..., EMB_RESULT]]
    let = params["letter_emb"][state[..., EMB_LETTER]]
    cols = jnp.tile(jnp.arange(COL_VOCAB), (B * 6,)).reshape(B, 6, COL_VOCAB)
    col = params["col_emb"][cols]
    x = (res + let + col).reshape(B, FEAT)                    # rearrange + view(B, -1)
    h = _elu(mm(x, params["w1"]) + params["b1"])
    h = _elu(mm(h, params["w2"]) + params["b2"])
    h = _elu(mm(h, params["w3"]) + params["b3"])
    x = mm(h, params["w4"]) + params["b4"]
    act = mm(_leaky(mm(x, params["wa1"]) + params["ba1"]), params["wa2"]) + params["ba2"]
    z = act - jnp.max(act, axis=-1, keepdims=True)
    denom = jnp.sum(jnp.exp(z), axis=-1, keepdims=True)
    probs = jnp.exp(z) / denom
    logp = z - jnp.log(denom)
    value = mm(x, params["wv"]) + params["bv"]
    return logp, probs, value


if __name__ == "__main__":
    key = jax.random.PRNGKey(0)
    pkey, rkey, lkey, akey = jax.random.split(key, 4)
    params = init_params(pkey)

    B = 2
    res_tok = jax.random.randint(rkey, (B, 6, 5), 0, RESULT_VOCAB, dtype=jnp.int32)
    let_tok = jax.random.randint(lkey, (B, 6, 5), 0, LETTER_VOCAB, dtype=jnp.int32)
    state = jnp.stack([res_tok, let_tok], axis=-1)            # (B, 6, 5, 2) int32

    action, logp, probs, value = zero_policy_forward(state, params, akey)
    jax.block_until_ready((action, logp, probs, value))

    ref_logp, ref_probs, ref_value = reference_forward(state, params)
    # Kernel matmuls run in bf16 (f32 accumulate); compare against the f32-HIGHEST reference
    # with tolerances sized for ~6 bf16 matmul layers.
    np.testing.assert_allclose(np.asarray(probs), np.asarray(ref_probs), rtol=2e-2, atol=5e-3)
    np.testing.assert_allclose(np.asarray(logp), np.asarray(ref_logp), rtol=2e-2, atol=5e-3)
    np.testing.assert_allclose(np.asarray(value), np.asarray(ref_value), rtol=2e-2, atol=5e-3)
    assert action.shape == (B,) and probs.shape == (B, ACTION_SPACE)
    assert logp.shape == (B, ACTION_SPACE) and value.shape == (B, 1)
    assert bool(jnp.all((action >= 0) & (action < ACTION_SPACE)))
    print("KERNEL_OK")
</pallas_src>

<mosaic_0001>
module attributes {stable_mosaic.version = 11 : i64} {
  func.func @zero_policy_kernel(%arg0: i32, %arg1: memref<8x64xi32, #tpu.memory_space<vmem>>, %arg2: memref<64x960xbf16, #tpu.memory_space<vmem>>, %arg3: memref<1x960xf32, #tpu.memory_space<vmem>>, %arg4: memref<960x256xbf16, #tpu.memory_space<vmem>>, %arg5: memref<1x256xf32, #tpu.memory_space<vmem>>, %arg6: memref<256x256xbf16, #tpu.memory_space<vmem>>, %arg7: memref<1x256xf32, #tpu.memory_space<vmem>>, %arg8: memref<256x256xbf16, #tpu.memory_space<vmem>>, %arg9: memref<1x256xf32, #tpu.memory_space<vmem>>, %arg10: memref<256x256xbf16, #tpu.memory_space<vmem>>, %arg11: memref<1x256xf32, #tpu.memory_space<vmem>>, %arg12: memref<256x256xbf16, #tpu.memory_space<vmem>>, %arg13: memref<1x256xf32, #tpu.memory_space<vmem>>, %arg14: memref<256x256xbf16, #tpu.memory_space<vmem>>, %arg15: memref<1x256xf32, #tpu.memory_space<vmem>>, %arg16: memref<256x128xbf16, #tpu.memory_space<vmem>>, %arg17: memref<1x128xf32, #tpu.memory_space<vmem>>, %arg18: memref<8x256xf32, #tpu.memory_space<vmem>>, %arg19: memref<8x256xf32, #tpu.memory_space<vmem>>, %arg20: memref<8x128xf32, #tpu.memory_space<vmem>>) attributes {dimension_semantics = [#tpu.dimension_semantics<parallel>], iteration_bounds = array<i64: 1>, scalar_prefetch = 0 : i64, scratch_operands = 0 : i64, tpu.core_type = #tpu.core_type<tc>, window_params = [{transform_indices = @transform_0, window_bounds = array<i64: 8, 64>}, {pipeline_mode = #tpu.pipeline_mode<synchronous>, transform_indices = @transform_1, window_bounds = array<i64: 64, 960>}, {pipeline_mode = #tpu.pipeline_mode<synchronous>, transform_indices = @transform_2, window_bounds = array<i64: 1, 960>}, {pipeline_mode = #tpu.pipeline_mode<synchronous>, transform_indices = @transform_3, window_bounds = array<i64: 960, 256>}, {pipeline_mode = #tpu.pipeline_mode<synchronous>, transform_indices = @transform_4, window_bounds = array<i64: 1, 256>}, {pipeline_mode = #tpu.pipeline_mode<synchronous>, transform_indices = @transform_5, window_bounds = array<i64: 256, 256>}, {pipeline_mode = #tpu.pipeline_mode<synchronous>, transform_indices = @transform_6, window_bounds = array<i64: 1, 256>}, {pipeline_mode = #tpu.pipeline_mode<synchronous>, transform_indices = @transform_7, window_bounds = array<i64: 256, 256>}, {pipeline_mode = #tpu.pipeline_mode<synchronous>, transform_indices = @transform_8, window_bounds = array<i64: 1, 256>}, {pipeline_mode = #tpu.pipeline_mode<synchronous>, transform_indices = @transform_9, window_bounds = array<i64: 256, 256>}, {pipeline_mode = #tpu.pipeline_mode<synchronous>, transform_indices = @transform_10, window_bounds = array<i64: 1, 256>}, {pipeline_mode = #tpu.pipeline_mode<synchronous>, transform_indices = @transform_11, window_bounds = array<i64: 256, 256>}, {pipeline_mode = #tpu.pipeline_mode<synchronous>, transform_indices = @transform_12, window_bounds = array<i64: 1, 256>}, {pipeline_mode = #tpu.pipeline_mode<synchronous>, transform_indices = @transform_13, window_bounds = array<i64: 256, 256>}, {pipeline_mode = #tpu.pipeline_mode<synchronous>, transform_indices = @transform_14, window_bounds = array<i64: 1, 256>}, {pipeline_mode = #tpu.pipeline_mode<synchronous>, transform_indices = @transform_15, window_bounds = array<i64: 256, 128>}, {pipeline_mode = #tpu.pipeline_mode<synchronous>, transform_indices = @transform_16, window_bounds = array<i64: 1, 128>}, {transform_indices = @transform_17, window_bounds = array<i64: 8, 256>}, {transform_indices = @transform_18, window_bounds = array<i64: 8, 256>}, {transform_indices = @transform_19, window_bounds = array<i64: 8, 128>}]} {
    %c0 = arith.constant 0 : index
    %c0_0 = arith.constant 0 : index
    %0 = vector.load %arg1[%c0, %c0_0] : memref<8x64xi32, #tpu.memory_space<vmem>>, vector<8x64xi32>
    %1 = arith.sitofp %0 : vector<8x64xi32> to vector<8x64xbf16>
    %c0_1 = arith.constant 0 : index
    %c0_2 = arith.constant 0 : index
    %2 = vector.load %arg2[%c0_1, %c0_2] : memref<64x960xbf16, #tpu.memory_space<vmem>>, vector<64x960xbf16>
    %cst = arith.constant dense<0.000000e+00> : vector<8x960xf32>
    %3 = tpu.matmul %1, %2, %cst {dimension_numbers = #tpu.dot_dimension_numbers<[1], [0], [0], [1], [0, 0, 1, 1], [], []>} : vector<8x64xbf16>, vector<64x960xbf16>, vector<8x960xf32> -> vector<8x960xf32>
    %c0_3 = arith.constant 0 : index
    %c0_4 = arith.constant 0 : index
    %4 = vector.load %arg3[%c0_3, %c0_4] : memref<1x960xf32, #tpu.memory_space<vmem>>, vector<1x960xf32>
    %5 = vector.broadcast %4 : vector<1x960xf32> to vector<8x960xf32>
    %6 = arith.cmpf oeq, %3, %5 : vector<8x960xf32>
    %7 = arith.extui %6 : vector<8x960xi1> to vector<8x960xi32>
    %8 = arith.sitofp %7 : vector<8x960xi32> to vector<8x960xf32>
    %9 = arith.truncf %8 : vector<8x960xf32> to vector<8x960xbf16>
    %c0_5 = arith.constant 0 : index
    %c0_6 = arith.constant 0 : index
    %10 = vector.load %arg4[%c0_5, %c0_6] : memref<960x256xbf16, #tpu.memory_space<vmem>>, vector<960x256xbf16>
    %cst_7 = arith.constant dense<0.000000e+00> : vector<8x256xf32>
    %11 = tpu.matmul %9, %10, %cst_7 {dimension_numbers = #tpu.dot_dimension_numbers<[1], [0], [0], [1], [0, 0, 1, 1], [], []>} : vector<8x960xbf16>, vector<960x256xbf16>, vector<8x256xf32> -> vector<8x256xf32>
    %c0_8 = arith.constant 0 : index
    %c0_9 = arith.constant 0 : index
    %12 = vector.load %arg5[%c0_8, %c0_9] : memref<1x256xf32, #tpu.memory_space<vmem>>, vector<1x256xf32>
    %13 = vector.broadcast %12 : vector<1x256xf32> to vector<8x256xf32>
    %14 = arith.addf %11, %13 : vector<8x256xf32>
    %cst_10 = arith.constant 0.000000e+00 : f32
    %15 = vector.broadcast %cst_10 : f32 to vector<8x256xf32>
    %16 = arith.cmpf ogt, %14, %15 : vector<8x256xf32>
    %cst_11 = arith.constant 0.000000e+00 : f32
    %17 = vector.broadcast %cst_11 : f32 to vector<8x256xf32>
    %18 = arith.minimumf %14, %17 : vector<8x256xf32>
    %19 = math.exp %18 : vector<8x256xf32>
    %cst_12 = arith.constant 1.000000e+00 : f32
    %20 = vector.broadcast %cst_12 : f32 to vector<8x256xf32>
    %21 = arith.subf %19, %20 : vector<8x256xf32>
    %22 = arith.select %16, %14, %21 : vector<8x256xi1>, vector<8x256xf32>
    %23 = arith.truncf %22 : vector<8x256xf32> to vector<8x256xbf16>
    %c0_13 = arith.constant 0 : index
    %c0_14 = arith.constant 0 : index
    %24 = vector.load %arg6[%c0_13, %c0_14] : memref<256x256xbf16, #tpu.memory_space<vmem>>, vector<256x256xbf16>
    %cst_15 = arith.constant dense<0.000000e+00> : vector<8x256xf32>
    %25 = tpu.matmul %23, %24, %cst_15 {dimension_numbers = #tpu.dot_dimension_numbers<[1], [0], [0], [1], [0, 0, 1, 1], [], []>} : vector<8x256xbf16>, vector<256x256xbf16>, vector<8x256xf32> -> vector<8x256xf32>
    %c0_16 = arith.constant 0 : index
    %c0_17 = arith.constant 0 : index
    %26 = vector.load %arg7[%c0_16, %c0_17] : memref<1x256xf32, #tpu.memory_space<vmem>>, vector<1x256xf32>
    %27 = vector.broadcast %26 : vector<1x256xf32> to vector<8x256xf32>
    %28 = arith.addf %25, %27 : vector<8x256xf32>
    %cst_18 = arith.constant 0.000000e+00 : f32
    %29 = vector.broadcast %cst_18 : f32 to vector<8x256xf32>
    %30 = arith.cmpf ogt, %28, %29 : vector<8x256xf32>
    %cst_19 = arith.constant 0.000000e+00 : f32
    %31 = vector.broadcast %cst_19 : f32 to vector<8x256xf32>
    %32 = arith.minimumf %28, %31 : vector<8x256xf32>
    %33 = math.exp %32 : vector<8x256xf32>
    %cst_20 = arith.constant 1.000000e+00 : f32
    %34 = vector.broadcast %cst_20 : f32 to vector<8x256xf32>
    %35 = arith.subf %33, %34 : vector<8x256xf32>
    %36 = arith.select %30, %28, %35 : vector<8x256xi1>, vector<8x256xf32>
    %37 = arith.truncf %36 : vector<8x256xf32> to vector<8x256xbf16>
    %c0_21 = arith.constant 0 : index
    %c0_22 = arith.constant 0 : index
    %38 = vector.load %arg8[%c0_21, %c0_22] : memref<256x256xbf16, #tpu.memory_space<vmem>>, vector<256x256xbf16>
    %cst_23 = arith.constant dense<0.000000e+00> : vector<8x256xf32>
    %39 = tpu.matmul %37, %38, %cst_23 {dimension_numbers = #tpu.dot_dimension_numbers<[1], [0], [0], [1], [0, 0, 1, 1], [], []>} : vector<8x256xbf16>, vector<256x256xbf16>, vector<8x256xf32> -> vector<8x256xf32>
    %c0_24 = arith.constant 0 : index
    %c0_25 = arith.constant 0 : index
    %40 = vector.load %arg9[%c0_24, %c0_25] : memref<1x256xf32, #tpu.memory_space<vmem>>, vector<1x256xf32>
    %41 = vector.broadcast %40 : vector<1x256xf32> to vector<8x256xf32>
    %42 = arith.addf %39, %41 : vector<8x256xf32>
    %cst_26 = arith.constant 0.000000e+00 : f32
    %43 = vector.broadcast %cst_26 : f32 to vector<8x256xf32>
    %44 = arith.cmpf ogt, %42, %43 : vector<8x256xf32>
    %cst_27 = arith.constant 0.000000e+00 : f32
    %45 = vector.broadcast %cst_27 : f32 to vector<8x256xf32>
    %46 = arith.minimumf %42, %45 : vector<8x256xf32>
    %47 = math.exp %46 : vector<8x256xf32>
    %cst_28 = arith.constant 1.000000e+00 : f32
    %48 = vector.broadcast %cst_28 : f32 to vector<8x256xf32>
    %49 = arith.subf %47, %48 : vector<8x256xf32>
    %50 = arith.select %44, %42, %49 : vector<8x256xi1>, vector<8x256xf32>
    %51 = arith.truncf %50 : vector<8x256xf32> to vector<8x256xbf16>
    %c0_29 = arith.constant 0 : index
    %c0_30 = arith.constant 0 : index
    %52 = vector.load %arg10[%c0_29, %c0_30] : memref<256x256xbf16, #tpu.memory_space<vmem>>, vector<256x256xbf16>
    %cst_31 = arith.constant dense<0.000000e+00> : vector<8x256xf32>
    %53 = tpu.matmul %51, %52, %cst_31 {dimension_numbers = #tpu.dot_dimension_numbers<[1], [0], [0], [1], [0, 0, 1, 1], [], []>} : vector<8x256xbf16>, vector<256x256xbf16>, vector<8x256xf32> -> vector<8x256xf32>
    %c0_32 = arith.constant 0 : index
    %c0_33 = arith.constant 0 : index
    %54 = vector.load %arg11[%c0_32, %c0_33] : memref<1x256xf32, #tpu.memory_space<vmem>>, vector<1x256xf32>
    %55 = vector.broadcast %54 : vector<1x256xf32> to vector<8x256xf32>
    %56 = arith.addf %53, %55 : vector<8x256xf32>
    %57 = arith.truncf %56 : vector<8x256xf32> to vector<8x256xbf16>
    %c0_34 = arith.constant 0 : index
    %c0_35 = arith.constant 0 : index
    %58 = vector.load %arg12[%c0_34, %c0_35] : memref<256x256xbf16, #tpu.memory_space<vmem>>, vector<256x256xbf16>
    %cst_36 = arith.constant dense<0.000000e+00> : vector<8x256xf32>
    %59 = tpu.matmul %57, %58, %cst_36 {dimension_numbers = #tpu.dot_dimension_numbers<[1], [0], [0], [1], [0, 0, 1, 1], [], []>} : vector<8x256xbf16>, vector<256x256xbf16>, vector<8x256xf32> -> vector<8x256xf32>
    %c0_37 = arith.constant 0 : index
    %c0_38 = arith.constant 0 : index
    %60 = vector.load %arg13[%c0_37, %c0_38] : memref<1x256xf32, #tpu.memory_space<vmem>>, vector<1x256xf32>
    %61 = vector.broadcast %60 : vector<1x256xf32> to vector<8x256xf32>
    %62 = arith.addf %59, %61 : vector<8x256xf32>
    %cst_39 = arith.constant 0.000000e+00 : f32
    %63 = vector.broadcast %cst_39 : f32 to vector<8x256xf32>
    %64 = arith.cmpf oge, %62, %63 : vector<8x256xf32>
    %cst_40 = arith.constant 0.00999999977 : f32
    %65 = vector.broadcast %cst_40 : f32 to vector<8x256xf32>
    %66 = arith.mulf %65, %62 : vector<8x256xf32>
    %67 = arith.select %64, %62, %66 : vector<8x256xi1>, vector<8x256xf32>
    %68 = arith.truncf %67 : vector<8x256xf32> to vector<8x256xbf16>
    %c0_41 = arith.constant 0 : index
    %c0_42 = arith.constant 0 : index
    %69 = vector.load %arg14[%c0_41, %c0_42] : memref<256x256xbf16, #tpu.memory_space<vmem>>, vector<256x256xbf16>
    %cst_43 = arith.constant dense<0.000000e+00> : vector<8x256xf32>
    %70 = tpu.matmul %68, %69, %cst_43 {dimension_numbers = #tpu.dot_dimension_numbers<[1], [0], [0], [1], [0, 0, 1, 1], [], []>} : vector<8x256xbf16>, vector<256x256xbf16>, vector<8x256xf32> -> vector<8x256xf32>
    %c0_44 = arith.constant 0 : index
    %c0_45 = arith.constant 0 : index
    %71 = vector.load %arg15[%c0_44, %c0_45] : memref<1x256xf32, #tpu.memory_space<vmem>>, vector<1x256xf32>
    %72 = vector.broadcast %71 : vector<1x256xf32> to vector<8x256xf32>
    %73 = arith.addf %70, %72 : vector<8x256xf32>
    %cst_46 = arith.constant dense<0xFF800000> : vector<8xf32>
    %74 = vector.multi_reduction <maximumf>, %73, %cst_46 [1] : vector<8x256xf32> to vector<8xf32>
    %75 = vector.shape_cast %74 : vector<8xf32> to vector<8x1xf32>
    %76 = vector.broadcast %75 : vector<8x1xf32> to vector<8x256xf32>
    %77 = arith.subf %73, %76 : vector<8x256xf32>
    %78 = math.exp %77 : vector<8x256xf32>
    %cst_47 = arith.constant dense<0.000000e+00> : vector<8xf32>
    %79 = vector.multi_reduction <add>, %78, %cst_47 [1] : vector<8x256xf32> to vector<8xf32>
    %80 = vector.shape_cast %79 : vector<8xf32> to vector<8x1xf32>
    %cst_48 = arith.constant 1.000000e+00 : f32
    %81 = vector.broadcast %cst_48 : f32 to vector<8x1xf32>
    %82 = arith.divf %81, %80 : vector<8x1xf32>
    %83 = vector.broadcast %82 : vector<8x1xf32> to vector<8x256xf32>
    %84 = arith.mulf %78, %83 : vector<8x256xf32>
    %c0_49 = arith.constant 0 : index
    %c0_50 = arith.constant 0 : index
    %85 = vector.load %arg18[%c0_49, %c0_50] : memref<8x256xf32, #tpu.memory_space<vmem>>, vector<8x256xf32>
    tpu.vector_store %arg18[%c0_49, %c0_50], %84 {strides = array<i32>} : memref<8x256xf32, #tpu.memory_space<vmem>>, vector<8x256xf32>,
    %86 = math.log %80 : vector<8x1xf32>
    %87 = vector.broadcast %86 : vector<8x1xf32> to vector<8x256xf32>
    %88 = arith.subf %77, %87 : vector<8x256xf32>
    %c0_51 = arith.constant 0 : index
    %c0_52 = arith.constant 0 : index
    %89 = vector.load %arg19[%c0_51, %c0_52] : memref<8x256xf32, #tpu.memory_space<vmem>>, vector<8x256xf32>
    tpu.vector_store %arg19[%c0_51, %c0_52], %88 {strides = array<i32>} : memref<8x256xf32, #tpu.memory_space<vmem>>, vector<8x256xf32>,
    %90 = arith.truncf %56 : vector<8x256xf32> to vector<8x256xbf16>
    %c0_53 = arith.constant 0 : index
    %c0_54 = arith.constant 0 : index
    %91 = vector.load %arg16[%c0_53, %c0_54] : memref<256x128xbf16, #tpu.memory_space<vmem>>, vector<256x128xbf16>
    %cst_55 = arith.constant dense<0.000000e+00> : vector<8x128xf32>
    %92 = tpu.matmul %90, %91, %cst_55 {dimension_numbers = #tpu.dot_dimension_numbers<[1], [0], [0], [1], [0, 0, 1, 1], [], []>} : vector<8x256xbf16>, vector<256x128xbf16>, vector<8x128xf32> -> vector<8x128xf32>
    %c0_56 = arith.constant 0 : index
    %c0_57 = arith.constant 0 : index
    %93 = vector.load %arg17[%c0_56, %c0_57] : memref<1x128xf32, #tpu.memory_space<vmem>>, vector<1x128xf32>
    %94 = vector.broadcast %93 : vector<1x128xf32> to vector<8x128xf32>
    %95 = arith.addf %92, %94 : vector<8x128xf32>
    %c0_58 = arith.constant 0 : index
    %c0_59 = arith.constant 0 : index
    %96 = vector.load %arg20[%c0_58, %c0_59] : memref<8x128xf32, #tpu.memory_space<vmem>>, vector<8x128xf32>
    tpu.vector_store %arg20[%c0_58, %c0_59], %95 {strides = array<i32>} : memref<8x128xf32, #tpu.memory_space<vmem>>, vector<8x128xf32>,
    return
  }
  func.func @transform_0(%arg0: i32) -> (i32, i32) {
    %c0_i32 = arith.constant 0 : i32
    %c0_i32_0 = arith.constant 0 : i32
    return %arg0, %c0_i32 : i32, i32
  }
  func.func @transform_1(%arg0: i32) -> (i32, i32) {
    %c0_i32 = arith.constant 0 : i32
    %c0_i32_0 = arith.constant 0 : i32
    %c0_i32_1 = arith.constant 0 : i32
    return %c0_i32, %c0_i32_0 : i32, i32
  }
  func.func @transform_2(%arg0: i32) -> (i32, i32) {
    %c0_i32 = arith.constant 0 : i32
    %c0_i32_0 = arith.constant 0 : i32
    %c0_i32_1 = arith.constant 0 : i32
    return %c0_i32, %c0_i32_0 : i32, i32
  }
  func.func @transform_3(%arg0: i32) -> (i32, i32) {
    %c0_i32 = arith.constant 0 : i32
    %c0_i32_0 = arith.constant 0 : i32
    %c0_i32_1 = arith.constant 0 : i32
    return %c0_i32, %c0_i32_0 : i32, i32
  }
  func.func @transform_4(%arg0: i32) -> (i32, i32) {
    %c0_i32 = arith.constant 0 : i32
    %c0_i32_0 = arith.constant 0 : i32
    %c0_i32_1 = arith.constant 0 : i32
    return %c0_i32, %c0_i32_0 : i32, i32
  }
  func.func @transform_5(%arg0: i32) -> (i32, i32) {
    %c0_i32 = arith.constant 0 : i32
    %c0_i32_0 = arith.constant 0 : i32
    %c0_i32_1 = arith.constant 0 : i32
    return %c0_i32, %c0_i32_0 : i32, i32
  }
  func.func @transform_6(%arg0: i32) -> (i32, i32) {
    %c0_i32 = arith.constant 0 : i32
    %c0_i32_0 = arith.constant 0 : i32
    %c0_i32_1 = arith.constant 0 : i32
    return %c0_i32, %c0_i32_0 : i32, i32
  }
  func.func @transform_7(%arg0: i32) -> (i32, i32) {
    %c0_i32 = arith.constant 0 : i32
    %c0_i32_0 = arith.constant 0 : i32
    %c0_i32_1 = arith.constant 0 : i32
    return %c0_i32, %c0_i32_0 : i32, i32
  }
  func.func @transform_8(%arg0: i32) -> (i32, i32) {
    %c0_i32 = arith.constant 0 : i32
    %c0_i32_0 = arith.constant 0 : i32
    %c0_i32_1 = arith.constant 0 : i32
    return %c0_i32, %c0_i32_0 : i32, i32
  }
  func.func @transform_9(%arg0: i32) -> (i32, i32) {
    %c0_i32 = arith.constant 0 : i32
    %c0_i32_0 = arith.constant 0 : i32
    %c0_i32_1 = arith.constant 0 : i32
    return %c0_i32, %c0_i32_0 : i32, i32
  }
  func.func @transform_10(%arg0: i32) -> (i32, i32) {
    %c0_i32 = arith.constant 0 : i32
    %c0_i32_0 = arith.constant 0 : i32
    %c0_i32_1 = arith.constant 0 : i32
    return %c0_i32, %c0_i32_0 : i32, i32
  }
  func.func @transform_11(%arg0: i32) -> (i32, i32) {
    %c0_i32 = arith.constant 0 : i32
    %c0_i32_0 = arith.constant 0 : i32
    %c0_i32_1 = arith.constant 0 : i32
    return %c0_i32, %c0_i32_0 : i32, i32
  }
  func.func @transform_12(%arg0: i32) -> (i32, i32) {
    %c0_i32 = arith.constant 0 : i32
    %c0_i32_0 = arith.constant 0 : i32
    %c0_i32_1 = arith.constant 0 : i32
    return %c0_i32, %c0_i32_0 : i32, i32
  }
  func.func @transform_13(%arg0: i32) -> (i32, i32) {
    %c0_i32 = arith.constant 0 : i32
    %c0_i32_0 = arith.constant 0 : i32
    %c0_i32_1 = arith.constant 0 : i32
    return %c0_i32, %c0_i32_0 : i32, i32
  }
  func.func @transform_14(%arg0: i32) -> (i32, i32) {
    %c0_i32 = arith.constant 0 : i32
    %c0_i32_0 = arith.constant 0 : i32
    %c0_i32_1 = arith.constant 0 : i32
    return %c0_i32, %c0_i32_0 : i32, i32
  }
  func.func @transform_15(%arg0: i32) -> (i32, i32) {
    %c0_i32 = arith.constant 0 : i32
    %c0_i32_0 = arith.constant 0 : i32
    %c0_i32_1 = arith.constant 0 : i32
    return %c0_i32, %c0_i32_0 : i32, i32
  }
  func.func @transform_16(%arg0: i32) -> (i32, i32) {
    %c0_i32 = arith.constant 0 : i32
    %c0_i32_0 = arith.constant 0 : i32
    %c0_i32_1 = arith.constant 0 : i32
    return %c0_i32, %c0_i32_0 : i32, i32
  }
  func.func @transform_17(%arg0: i32) -> (i32, i32) {
    %c0_i32 = arith.constant 0 : i32
    %c0_i32_0 = arith.constant 0 : i32
    return %arg0, %c0_i32 : i32, i32
  }
  func.func @transform_18(%arg0: i32) -> (i32, i32) {
    %c0_i32 = arith.constant 0 : i32
    %c0_i32_0 = arith.constant 0 : i32
    return %arg0, %c0_i32 : i32, i32
  }
  func.func @transform_19(%arg0: i32) -> (i32, i32) {
    %c0_i32 = arith.constant 0 : i32
    %c0_i32_0 = arith.constant 0 : i32
    return %arg0, %c0_i32 : i32, i32
  }
}

</mosaic_0001>

<llo_original>
// kernel: tpu_custom_call.1
$region0: #{tpu_custom_call.1}
  #allocation0 [shape = 'u32[]', space=smem, size = 0x4, offset = 0x4, fixed_abs, tag = 'smem constant byte address 0x4 - core index']
  #allocation1 [shape = 'u32[144,128]{1,0:T(1,128)}', space=vmem, size = 0x12000, scoped, tag = 'internal scratch']
  %s0 = inlined_call_operand.hbm [shape: s32[8,64], index: 0, kind: input, shape index: {}]
  %s1 = inlined_call_operand.hbm [shape: bf16[64,960], index: 1, kind: input, shape index: {}]
  %s2 = inlined_call_operand.hbm [shape: f32[1,960], index: 2, kind: input, shape index: {}]
  %s3 = inlined_call_operand.hbm [shape: bf16[960,256], index: 3, kind: input, shape index: {}]
  %s4 = inlined_call_operand.vmem [shape: f32[1,256], index: 4, kind: input, shape index: {}]
  %s5 = inlined_call_operand.hbm [shape: bf16[256,256], index: 5, kind: input, shape index: {}]
  %s6 = inlined_call_operand.vmem [shape: f32[1,256], index: 6, kind: input, shape index: {}]
  %s7 = inlined_call_operand.hbm [shape: bf16[256,256], index: 7, kind: input, shape index: {}]
  %s8 = inlined_call_operand.vmem [shape: f32[1,256], index: 8, kind: input, shape index: {}]
  %s9 = inlined_call_operand.hbm [shape: bf16[256,256], index: 9, kind: input, shape index: {}]
  %s10 = inlined_call_operand.vmem [shape: f32[1,256], index: 10, kind: input, shape index: {}]
  %s11 = inlined_call_operand.hbm [shape: bf16[256,256], index: 11, kind: input, shape index: {}]
  %s12 = inlined_call_operand.vmem [shape: f32[1,256], index: 12, kind: input, shape index: {}]
  %s13 = inlined_call_operand.hbm [shape: bf16[256,256], index: 13, kind: input, shape index: {}]
  %s14 = inlined_call_operand.vmem [shape: f32[1,256], index: 14, kind: input, shape index: {}]
  %s15 = inlined_call_operand.hbm [shape: bf16[256,128], index: 15, kind: input, shape index: {}]
  %s16 = inlined_call_operand.vmem [shape: f32[1,128], index: 16, kind: input, shape index: {}]
  %s17 = inlined_call_operand.hbm [shape: f32[8,256], index: 17, kind: output, shape index: {0}]
  %s18 = inlined_call_operand.hbm [shape: f32[8,256], index: 18, kind: output, shape index: {1}]
  %s19 = inlined_call_operand.hbm [shape: f32[8,128], index: 19, kind: output, shape index: {2}]
  %20 = xla_tuple %s17, %s18, %s19
  %s21 = sld [smem:[#allocation0]]
  $region134: #{tpu_custom_call.1} parent=0
    _
  %s23 = ssub.s32 1, %s21
  %s24 = scalar_select 0, %s23, %s21
  $region1: #{tpu_custom_call.1} parent=0
    #allocation2 [shape = 'u8[4096]{0}', space=vmem, size = 0x1000, scoped, tag = 'input window, operand 0, single buffered']
    #allocation3 [shape = 's32[1]{0}', space=sflag, size = 0x4, scoped, tag = 'scoped memory for tpu_custom_call.1']
    #allocation4 [shape = 's32[1]{0}', space=sflag, size = 0x4, scoped, tag = 'scoped memory for tpu_custom_call.1']
    #allocation5 [shape = 'u8[131072]{0}', space=vmem, size = 0x20000, scoped, tag = 'input window, operand 1, single buffered']
    #allocation6 [shape = 's32[1]{0}', space=sflag, size = 0x4, scoped, tag = 'scoped memory for tpu_custom_call.1']
    #allocation7 [shape = 'u8[4096]{0}', space=vmem, size = 0x1000, scoped, tag = 'input window, operand 2, single buffered']
    #allocation8 [shape = 'u8[491520]{0}', space=vmem, size = 0x78000, scoped, tag = 'input window, operand 3, single buffered']
    #allocation9 [shape = 's32[1]{0}', space=sflag, size = 0x4, scoped, tag = 'scoped memory for tpu_custom_call.1']
    #allocation10 [shape = 'u8[131072]{0}', space=vmem, size = 0x20000, scoped, tag = 'input window, operand 5, single buffered']
    #allocation11 [shape = 'u8[131072]{0}', space=vmem, size = 0x20000, scoped, tag = 'input window, operand 7, single buffered']
    #allocation12 [shape = 's32[1]{0}', space=sflag, size = 0x4, scoped, tag = 'scoped memory for tpu_custom_call.1']
    #allocation13 [shape = 'u8[131072]{0}', space=vmem, size = 0x20000, scoped, tag = 'input window, operand 9, single buffered']
    #allocation14 [shape = 'u8[131072]{0}', space=vmem, size = 0x20000, scoped, tag = 'input window, operand 11, single buffered']
    #allocation15 [shape = 's32[1]{0}', space=sflag, size = 0x4, scoped, tag = 'scoped memory for tpu_custom_call.1']
    #allocation16 [shape = 'u8[131072]{0}', space=vmem, size = 0x20000, scoped, tag = 'input window, operand 13, single buffered']
    #allocation17 [shape = 'u8[65536]{0}', space=vmem, size = 0x10000, scoped, tag = 'input window, operand 15, single buffered']
    #allocation18 [shape = 's32[1]{0}', space=sflag, size = 0x4, scoped, tag = 'scoped memory for tpu_custom_call.1']
    #allocation19 [shape = 'u8[8192]{0}', space=vmem, size = 0x2000, scoped, tag = 'output window, operand 0, single buffered']
    #allocation20 [shape = 'u8[8192]{0}', space=vmem, size = 0x2000, scoped, tag = 'output window, operand 1, single buffered']
    #allocation21 [shape = 's32[1]{0}', space=sflag, size = 0x4, scoped, tag = 'scoped memory for tpu_custom_call.1']
    #allocation22 [shape = 'u8[4096]{0}', space=vmem, size = 0x1000, scoped, tag = 'output window, operand 2, single buffered']
    %25 = vsyncpa [#allocation3], 0
    %26 = vsyncpa [#allocation6], 0
    %27 = vsyncpa [#allocation9], 0
    %28 = vsyncpa [#allocation12], 0
    %29 = vsyncpa [#allocation15], 0
    %30 = vsyncpa [#allocation18], 0
    %31 = vsyncpa [#allocation4], 0
    %32 = vsyncpa [#allocation21], 0
    // Predicated region
    $region2: #{tpu_custom_call.1} parent=1 // pred_check
      _
    $region3: #{tpu_custom_call.1} parent=1 // pred_check_branch
      %34 = sbr.rel (0) target = $region5
    $region4: #{tpu_custom_call.1} parent=1 // pred_region
      %s36 = ssub.s32 128, 128
      %37 = vsyncadd [#allocation3], %s36
      %s39 = sshll.u32 [#allocation2], 4
      %s40 = int_to_ptr.vmem [resolvable:$true] %s39
      %42 = dma.hbm_to_vmem [thread:$0]  %s0, 128, %s40, [#allocation3]
    $region5: #{tpu_custom_call.1} parent=1 // pred_fallthru
      _
    // Predicated region
    $region6: #{tpu_custom_call.1} parent=1 // pred_check
      _
    $region7: #{tpu_custom_call.1} parent=1 // pred_check_branch
      %44 = sbr.rel (0) target = $region9
    $region8: #{tpu_custom_call.1} parent=1 // pred_region
      %s46 = ssub.s32 4096, 4096
      %47 = vsyncadd [#allocation6], %s46
      %s48 = sshll.u32 [#allocation5], 4
      %s49 = int_to_ptr.vmem [resolvable:$true] %s48
      %54 = dma.hbm_to_vmem [thread:$0]  %s1, 4096, %s49, [#allocation6], 512, 512, 32
    $region9: #{tpu_custom_call.1} parent=1 // pred_fallthru
      _
    // Predicated region
    $region10: #{tpu_custom_call.1} parent=1 // pred_check
      _
    $region11: #{tpu_custom_call.1} parent=1 // pred_check_branch
      %56 = sbr.rel (0) target = $region13
    $region12: #{tpu_custom_call.1} parent=1 // pred_region
      %s58 = ssub.s32 128, 128
      %59 = vsyncadd [#allocation6], %s58
      %s61 = sshll.u32 [#allocation7], 4
      %s62 = int_to_ptr.vmem [resolvable:$true] %s61
      %64 = dma.hbm_to_vmem [thread:$0]  %s2, 128, %s62, [#allocation6]
    $region13: #{tpu_custom_call.1} parent=1 // pred_fallthru
      _
    // Predicated region
    $region14: #{tpu_custom_call.1} parent=1 // pred_check
      _
    $region15: #{tpu_custom_call.1} parent=1 // pred_check_branch
      %66 = sbr.rel (0) target = $region17
    $region16: #{tpu_custom_call.1} parent=1 // pred_region
      %s68 = ssub.s32 15360, 15360
      %69 = vsyncadd [#allocation9], %s68
      %s70 = sshll.u32 [#allocation8], 4
      %s71 = int_to_ptr.vmem [resolvable:$true] %s70
      %76 = dma.hbm_to_vmem [thread:$0]  %s3, 15360, %s71, [#allocation9], 128, 128, 8
    $region17: #{tpu_custom_call.1} parent=1 // pred_fallthru
      _
    // Predicated region
    $region18: #{tpu_custom_call.1} parent=1 // pred_check
      _
    $region19: #{tpu_custom_call.1} parent=1 // pred_check_branch
      %78 = sbr.rel (0) target = $region21
    $region20: #{tpu_custom_call.1} parent=1 // pred_region
      _
    $region21: #{tpu_custom_call.1} parent=1 // pred_fallthru
      _
    // Predicated region
    $region22: #{tpu_custom_call.1} parent=1 // pred_check
      _
    $region23: #{tpu_custom_call.1} parent=1 // pred_check_branch
      %80 = sbr.rel (0) target = $region25
    $region24: #{tpu_custom_call.1} parent=1 // pred_region
      %s82 = ssub.s32 4096, 4096
      %83 = vsyncadd [#allocation9], %s82
      %s84 = sshll.u32 [#allocation10], 4
      %s85 = int_to_ptr.vmem [resolvable:$true] %s84
      %90 = dma.hbm_to_vmem [thread:$0]  %s5, 4096, %s85, [#allocation9], 128, 128, 8
    $region25: #{tpu_custom_call.1} parent=1 // pred_fallthru
      _
    // Predicated region
    $region26: #{tpu_custom_call.1} parent=1 // pred_check
      _
    $region27: #{tpu_custom_call.1} parent=1 // pred_check_branch
      %92 = sbr.rel (0) target = $region29
    $region28: #{tpu_custom_call.1} parent=1 // pred_region
      _
    $region29: #{tpu_custom_call.1} parent=1 // pred_fallthru
      _
    // Predicated region
    $region30: #{tpu_custom_call.1} parent=1 // pred_check
      _
    $region31: #{tpu_custom_call.1} parent=1 // pred_check_branch
      %94 = sbr.rel (0) target = $region33
    $region32: #{tpu_custom_call.1} parent=1 // pred_region
      %s96 = ssub.s32 4096, 4096
      %97 = vsyncadd [#allocation12], %s96
      %s98 = sshll.u32 [#allocation11], 4
      %s99 = int_to_ptr.vmem [resolvable:$true] %s98
      %104 = dma.hbm_to_vmem [thread:$0]  %s7, 4096, %s99, [#allocation12], 128, 128, 8
    $region33: #{tpu_custom_call.1} parent=1 // pred_fallthru
      _
    // Predicated region
    $region34: #{tpu_custom_call.1} parent=1 // pred_check
      _
    $region35: #{tpu_custom_call.1} parent=1 // pred_check_branch
      %106 = sbr.rel (0) target = $region37
    $region36: #{tpu_custom_call.1} parent=1 // pred_region
      _
    $region37: #{tpu_custom_call.1} parent=1 // pred_fallthru
      _
    // Predicated region
    $region38: #{tpu_custom_call.1} parent=1 // pred_check
      _
    $region39: #{tpu_custom_call.1} parent=1 // pred_check_branch
      %108 = sbr.rel (0) target = $region41
    $region40: #{tpu_custom_call.1} parent=1 // pred_region
      %s110 = ssub.s32 4096, 4096
      %111 = vsyncadd [#allocation12], %s110
      %s112 = sshll.u32 [#allocation13], 4
      %s113 = int_to_ptr.vmem [resolvable:$true] %s112
      %118 = dma.hbm_to_vmem [thread:$0]  %s9, 4096, %s113, [#allocation12], 128, 128, 8
    $region41: #{tpu_custom_call.1} parent=1 // pred_fallthru
      _
    // Predicated region
    $region42: #{tpu_custom_call.1} parent=1 // pred_check
      _
    $region43: #{tpu_custom_call.1} parent=1 // pred_check_branch
      %120 = sbr.rel (0) target = $region45
    $region44: #{tpu_custom_call.1} parent=1 // pred_region
      _
    $region45: #{tpu_custom_call.1} parent=1 // pred_fallthru
      _
    // Predicated region
    $region46: #{tpu_custom_call.1} parent=1 // pred_check
      _
    $region47: #{tpu_custom_call.1} parent=1 // pred_check_branch
      %122 = sbr.rel (0) target = $region49
    $region48: #{tpu_custom_call.1} parent=1 // pred_region
      %s124 = ssub.s32 4096, 4096
      %125 = vsyncadd [#allocation15], %s124
      %s126 = sshll.u32 [#allocation14], 4
      %s127 = int_to_ptr.vmem [resolvable:$true] %s126
      %132 = dma.hbm_to_vmem [thread:$0]  %s11, 4096, %s127, [#allocation15], 128, 128, 8
    $region49: #{tpu_custom_call.1} parent=1 // pred_fallthru
      _
    // Predicated region
    $region50: #{tpu_custom_call.1} parent=1 // pred_check
      _
    $region51: #{tpu_custom_call.1} parent=1 // pred_check_branch
      %134 = sbr.rel (0) target = $region53
    $region52: #{tpu_custom_call.1} parent=1 // pred_region
      _
    $region53: #{tpu_custom_call.1} parent=1 // pred_fallthru
      _
    // Predicated region
    $region54: #{tpu_custom_call.1} parent=1 // pred_check
      _
    $region55: #{tpu_custom_call.1} parent=1 // pred_check_branch
      %136 = sbr.rel (0) target = $region57
    $region56: #{tpu_custom_call.1} parent=1 // pred_region
      %s138 = ssub.s32 4096, 4096
      %139 = vsyncadd [#allocation15], %s138
      %s140 = sshll.u32 [#allocation16], 4
      %s141 = int_to_ptr.vmem [resolvable:$true] %s140
      %146 = dma.hbm_to_vmem [thread:$0]  %s13, 4096, %s141, [#allocation15], 128, 128, 8
    $region57: #{tpu_custom_call.1} parent=1 // pred_fallthru
      _
    // Predicated region
    $region58: #{tpu_custom_call.1} parent=1 // pred_check
      _
    $region59: #{tpu_custom_call.1} parent=1 // pred_check_branch
      %148 = sbr.rel (0) target = $region61
    $region60: #{tpu_custom_call.1} parent=1 // pred_region
      _
    $region61: #{tpu_custom_call.1} parent=1 // pred_fallthru
      _
    // Predicated region
    $region62: #{tpu_custom_call.1} parent=1 // pred_check
      _
    $region63: #{tpu_custom_call.1} parent=1 // pred_check_branch
      %150 = sbr.rel (0) target = $region65
    $region64: #{tpu_custom_call.1} parent=1 // pred_region
      %s152 = ssub.s32 2048, 2048
      %153 = vsyncadd [#allocation18], %s152
      %s154 = sshll.u32 [#allocation17], 4
      %s155 = int_to_ptr.vmem [resolvable:$true] %s154
      %160 = dma.hbm_to_vmem [thread:$0]  %s15, 2048, %s155, [#allocation18], 64, 64, 4
    $region65: #{tpu_custom_call.1} parent=1 // pred_fallthru
      _
    // Predicated region
    $region66: #{tpu_custom_call.1} parent=1 // pred_check
      _
    $region67: #{tpu_custom_call.1} parent=1 // pred_check_branch
      %162 = sbr.rel (0) target = $region69
    $region68: #{tpu_custom_call.1} parent=1 // pred_region
      _
    $region69: #{tpu_custom_call.1} parent=1 // pred_fallthru
      _
    // Predicated region
    $region70: #{tpu_custom_call.1} parent=1 // pred_check
      _
    $region71: #{tpu_custom_call.1} parent=1 // pred_check_branch
      %164 = sbr.rel (0) target = $region73
    $region72: #{tpu_custom_call.1} parent=1 // pred_region
      %165 = dma.done [#allocation3], 128
    $region73: #{tpu_custom_call.1} parent=1 // pred_fallthru
      _
    // Predicated region
    $region74: #{tpu_custom_call.1} parent=1 // pred_check
      _
    $region75: #{tpu_custom_call.1} parent=1 // pred_check_branch
      %167 = sbr.rel (0) target = $region77
    $region76: #{tpu_custom_call.1} parent=1 // pred_region
      %168 = dma.done [#allocation6], 4096
    $region77: #{tpu_custom_call.1} parent=1 // pred_fallthru
      _
    // Predicated region
    $region78: #{tpu_custom_call.1} parent=1 // pred_check
      _
    $region79: #{tpu_custom_call.1} parent=1 // pred_check_branch
      %170 = sbr.rel (0) target = $region81
    $region80: #{tpu_custom_call.1} parent=1 // pred_region
      %171 = dma.done [#allocation6], 128
    $region81: #{tpu_custom_call.1} parent=1 // pred_fallthru
      _
    // Predicated region
    $region82: #{tpu_custom_call.1} parent=1 // pred_check
      _
    $region83: #{tpu_custom_call.1} parent=1 // pred_check_branch
      %173 = sbr.rel (0) target = $region85
    $region84: #{tpu_custom_call.1} parent=1 // pred_region
      %174 = dma.done [#allocation9], 15360
    $region85: #{tpu_custom_call.1} parent=1 // pred_fallthru
      _
    // Predicated region
    $region86: #{tpu_custom_call.1} parent=1 // pred_check
      _
    $region87: #{tpu_custom_call.1} parent=1 // pred_check_branch
      %176 = sbr.rel (0) target = $region89
    $region88: #{tpu_custom_call.1} parent=1 // pred_region
      %177 = dma.done [#allocation9], 4096
    $region89: #{tpu_custom_call.1} parent=1 // pred_fallthru
      _
    // Predicated region
    $region90: #{tpu_custom_call.1} parent=1 // pred_check
      _
    $region91: #{tpu_custom_call.1} parent=1 // pred_check_branch
      %179 = sbr.rel (0) target = $region93
    $region92: #{tpu_custom_call.1} parent=1 // pred_region
      %180 = dma.done [#allocation12], 4096
    $region93: #{tpu_custom_call.1} parent=1 // pred_fallthru
      _
    // Predicated region
    $region94: #{tpu_custom_call.1} parent=1 // pred_check
      _
    $region95: #{tpu_custom_call.1} parent=1 // pred_check_branch
      %182 = sbr.rel (0) target = $region97
    $region96: #{tpu_custom_call.1} parent=1 // pred_region
      %183 = dma.done [#allocation12], 4096
    $region97: #{tpu_custom_call.1} parent=1 // pred_fallthru
      _
    // Predicated region
    $region98: #{tpu_custom_call.1} parent=1 // pred_check
      _
    $region99: #{tpu_custom_call.1} parent=1 // pred_check_branch
      %185 = sbr.rel (0) target = $region101
    $region100: #{tpu_custom_call.1} parent=1 // pred_region
      %186 = dma.done [#allocation15], 4096
    $region101: #{tpu_custom_call.1} parent=1 // pred_fallthru
      _
    // Predicated region
    $region102: #{tpu_custom_call.1} parent=1 // pred_check
      _
    $region103: #{tpu_custom_call.1} parent=1 // pred_check_branch
      %188 = sbr.rel (0) target = $region105
    $region104: #{tpu_custom_call.1} parent=1 // pred_region
      %189 = dma.done [#allocation15], 4096
    $region105: #{tpu_custom_call.1} parent=1 // pred_fallthru
      _
    // Predicated region
    $region106: #{tpu_custom_call.1} parent=1 // pred_check
      _
    $region107: #{tpu_custom_call.1} parent=1 // pred_check_branch
      %191 = sbr.rel (0) target = $region109
    $region108: #{tpu_custom_call.1} parent=1 // pred_region
      %192 = dma.done [#allocation18], 2048
    $region109: #{tpu_custom_call.1} parent=1 // pred_fallthru
      _
    %v194 = vld [vmem:[#allocation2] sm:$0xff]
    %v195 = vcvt.s32.f32 %v194
    %v196 = vpack.c.bf16 %v195, %v195
    %v197 = vld [vmem:[#allocation5] sm:$0xff]
    %v198 = vld [vmem:[#allocation5 + $0x8] sm:$0xff]
    %v199 = vld [vmem:[#allocation5 + $0x10] sm:$0xff]
    %v200 = vld [vmem:[#allocation5 + $0x18] sm:$0xff]
    %v201 = vld [vmem:[#allocation5 + $0x20] sm:$0xff]
    %v202 = vld [vmem:[#allocation5 + $0x28] sm:$0xff]
    %v203 = vld [vmem:[#allocation5 + $0x30] sm:$0xff]
    %v204 = vld [vmem:[#allocation5 + $0x38] sm:$0xff]
    %v205 = vld [vmem:[#allocation5 + $0x40] sm:$0xff]
    %v206 = vld [vmem:[#allocation5 + $0x48] sm:$0xff]
    %v207 = vld [vmem:[#allocation5 + $0x50] sm:$0xff]
    %v208 = vld [vmem:[#allocation5 + $0x58] sm:$0xff]
    %v209 = vld [vmem:[#allocation5 + $0x60] sm:$0xff]
    %v210 = vld [vmem:[#allocation5 + $0x68] sm:$0xff]
    %v211 = vld [vmem:[#allocation5 + $0x70] sm:$0xff]
    %v212 = vld [vmem:[#allocation5 + $0x78] sm:$0xff]
    %v213 = vld [vmem:[#allocation5 + $0x80] sm:$0xff]
    %v214 = vld [vmem:[#allocation5 + $0x88] sm:$0xff]
    %v215 = vld [vmem:[#allocation5 + $0x90] sm:$0xff]
    %v216 = vld [vmem:[#allocation5 + $0x98] sm:$0xff]
    %v217 = vld [vmem:[#allocation5 + $0xa0] sm:$0xff]
    %v218 = vld [vmem:[#allocation5 + $0xa8] sm:$0xff]
    %v219 = vld [vmem:[#allocation5 + $0xb0] sm:$0xff]
    %v220 = vld [vmem:[#allocation5 + $0xb8] sm:$0xff]
    %v221 = vld [vmem:[#allocation5 + $0xc0] sm:$0xff]
    %v222 = vld [vmem:[#allocation5 + $0xc8] sm:$0xff]
    %v223 = vld [vmem:[#allocation5 + $0xd0] sm:$0xff]
    %v224 = vld [vmem:[#allocation5 + $0xd8] sm:$0xff]
    %v225 = vld [vmem:[#allocation5 + $0xe0] sm:$0xff]
    %v226 = vld [vmem:[#allocation5 + $0xe8] sm:$0xff]
    %v227 = vld [vmem:[#allocation5 + $0xf0] sm:$0xff]
    %v228 = vld [vmem:[#allocation5 + $0xf8] sm:$0xff]
    %v261 = vunpack.c.l.b16 %v197
    %v262 = vunpack.c.h.b16 %v197
    %v263 = vunpack.c.l.b16 %v198
    %v264 = vunpack.c.h.b16 %v198
    %v265 = vunpack.c.l.b16 %v199
    %v266 = vunpack.c.h.b16 %v199
    %v267 = vunpack.c.l.b16 %v200
    %v268 = vunpack.c.h.b16 %v200
    %v269 = vunpack.c.l.b16 %v201
    %v270 = vunpack.c.h.b16 %v201
    %v271 = vunpack.c.l.b16 %v202
    %v272 = vunpack.c.h.b16 %v202
    %v273 = vunpack.c.l.b16 %v203
    %v274 = vunpack.c.h.b16 %v203
    %v275 = vunpack.c.l.b16 %v204
    %v276 = vunpack.c.h.b16 %v204
    %v277 = vunpack.c.l.b16 %v205
    %v278 = vunpack.c.h.b16 %v205
    %v279 = vunpack.c.l.b16 %v206
    %v280 = vunpack.c.h.b16 %v206
    %v281 = vunpack.c.l.b16 %v207
    %v282 = vunpack.c.h.b16 %v207
    %v283 = vunpack.c.l.b16 %v208
    %v284 = vunpack.c.h.b16 %v208
    %v285 = vunpack.c.l.b16 %v209
    %v286 = vunpack.c.h.b16 %v209
    %v287 = vunpack.c.l.b16 %v210
    %v288 = vunpack.c.h.b16 %v210
    %v289 = vunpack.c.l.b16 %v211
    %v290 = vunpack.c.h.b16 %v211
    %v291 = vunpack.c.l.b16 %v212
    %v292 = vunpack.c.h.b16 %v212
    %v293 = vunpack.c.l.b16 %v213
    %v294 = vunpack.c.h.b16 %v213
    %v295 = vunpack.c.l.b16 %v214
    %v296 = vunpack.c.h.b16 %v214
    %v297 = vunpack.c.l.b16 %v215
    %v298 = vunpack.c.h.b16 %v215
    %v299 = vunpack.c.l.b16 %v216
    %v300 = vunpack.c.h.b16 %v216
    %v301 = vunpack.c.l.b16 %v217
    %v302 = vunpack.c.h.b16 %v217
    %v303 = vunpack.c.l.b16 %v218
    %v304 = vunpack.c.h.b16 %v218
    %v305 = vunpack.c.l.b16 %v219
    %v306 = vunpack.c.h.b16 %v219
    %v307 = vunpack.c.l.b16 %v220
    %v308 = vunpack.c.h.b16 %v220
    %v309 = vunpack.c.l.b16 %v221
    %v310 = vunpack.c.h.b16 %v221
    %v311 = vunpack.c.l.b16 %v222
    %v312 = vunpack.c.h.b16 %v222
    %v313 = vunpack.c.l.b16 %v223
    %v314 = vunpack.c.h.b16 %v223
    %v315 = vunpack.c.l.b16 %v224
    %v316 = vunpack.c.h.b16 %v224
    %v317 = vunpack.c.l.b16 %v225
    %v318 = vunpack.c.h.b16 %v225
    %v319 = vunpack.c.l.b16 %v226
    %v320 = vunpack.c.h.b16 %v226
    %v321 = vunpack.c.l.b16 %v227
    %v322 = vunpack.c.h.b16 %v227
    %v323 = vunpack.c.l.b16 %v228
    %v324 = vunpack.c.h.b16 %v228
    %v325 = vpack.c.b16 %v269, %v261
    %v326 = vpack.c.b16 %v270, %v262
    %v327 = vpack.c.b16 %v271, %v263
    %v328 = vpack.c.b16 %v272, %v264
    %v329 = vpack.c.b16 %v273, %v265
    %v330 = vpack.c.b16 %v274, %v266
    %v331 = vpack.c.b16 %v275, %v267
    %v332 = vpack.c.b16 %v276, %v268
    %v333 = vpack.c.b16 %v285, %v277
    %v334 = vpack.c.b16 %v286, %v278
    %v335 = vpack.c.b16 %v287, %v279
    %v336 = vpack.c.b16 %v288, %v280
    %v337 = vpack.c.b16 %v289, %v281
    %v338 = vpack.c.b16 %v290, %v282
    %v339 = vpack.c.b16 %v291, %v283
    %v340 = vpack.c.b16 %v292, %v284
    %v341 = vpack.c.b16 %v301, %v293
    %v342 = vpack.c.b16 %v302, %v294
    %v343 = vpack.c.b16 %v303, %v295
    %v344 = vpack.c.b16 %v304, %v296
    %v345 = vpack.c.b16 %v305, %v297
    %v346 = vpack.c.b16 %v306, %v298
    %v347 = vpack.c.b16 %v307, %v299
    %v348 = vpack.c.b16 %v308, %v300
    %v349 = vpack.c.b16 %v317, %v309
    %v350 = vpack.c.b16 %v318, %v310
    %v351 = vpack.c.b16 %v319, %v311
    %v352 = vpack.c.b16 %v320, %v312
    %v353 = vpack.c.b16 %v321, %v313
    %v354 = vpack.c.b16 %v322, %v314
    %v355 = vpack.c.b16 %v323, %v315
    %v356 = vpack.c.b16 %v324, %v316
    %vm389 = vcmask 523264
    %v391 = vsel %vm389, %v196, 0
    %393 = vmatprep.subr.bf16.mxu0 0
    %394 = vmatpush1.bf16.msra.mxu0 0
    %395 = vmatprep.subr.bf16.mxu0 0
    %396 = vmatpush1.bf16.msra.mxu0 0
    %397 = vmatprep.subr.bf16.mxu0 0
    %398 = vmatpush1.bf16.msra.mxu0 0
    %399 = vmatprep.subr.bf16.mxu0 0
    %400 = vmatpush1.bf16.msra.mxu0 0
    %401 = vmatprep.subr.bf16.mxu0 %v350
    %402 = vmatpush1.bf16.msra.mxu0 %v349
    %403 = vmatprep.subr.bf16.mxu0 %v342
    %404 = vmatpush1.bf16.msra.mxu0 %v341
    %405 = vmatprep.subr.bf16.mxu0 %v334
    %406 = vmatpush1.bf16.msra.mxu0 %v333
    %407 = vmatprep.subr.bf16.mxu0 %v326
    %408 = vmatpush1.bf16.msra.mxu0 %v325
    %409 = vmatprep.subr.bf16.mxu0 0
    %410 = vmatpush2.bf16.msra.mxu0 0
    %411 = vmatprep.subr.bf16.mxu0 0
    %412 = vmatpush2.bf16.msra.mxu0 0
    %413 = vmatprep.subr.bf16.mxu0 0
    %414 = vmatpush2.bf16.msra.mxu0 0
    %415 = vmatprep.subr.bf16.mxu0 0
    %416 = vmatpush2.bf16.msra.mxu0 0
    %417 = vmatprep.subr.bf16.mxu0 0
    %418 = vmatpush2.bf16.msra.mxu0 0
    %419 = vmatprep.subr.bf16.mxu0 0
    %420 = vmatpush2.bf16.msra.mxu0 0
    %421 = vmatprep.subr.bf16.mxu0 0
    %422 = vmatpush2.bf16.msra.mxu0 0
    %423 = vmatprep.subr.bf16.mxu0 0
    %424 = vmatpush2.bf16.msra.mxu0 0
    %425 = vmatprep.mubr.bf16.mxu0 0
    %426 = vmatmul.mubr.bf16.gmra.mxu0 %v391
    %v427 = vpop.f32.mrf.mxu0
    %v428 = vadd.f32 0.0, %v427
    %v429 = vpop.f32.mrf.mxu0
    %v430 = vadd.f32 0.0, %v429
    %v431 = vpop.f32.mrf.mxu0
    %v432 = vpop.f32.mrf.mxu0
    %433 = vdwg.mxu0
    %434 = vmatprep.subr.bf16.mxu0 0
    %435 = vmatpush1.bf16.msra.mxu0 0
    %436 = vmatprep.subr.bf16.mxu0 0
    %437 = vmatpush1.bf16.msra.mxu0 0
    %438 = vmatprep.subr.bf16.mxu0 0
    %439 = vmatpush1.bf16.msra.mxu0 0
    %440 = vmatprep.subr.bf16.mxu0 0
    %441 = vmatpush1.bf16.msra.mxu0 0
    %442 = vmatprep.subr.bf16.mxu0 %v352
    %443 = vmatpush1.bf16.msra.mxu0 %v351
    %444 = vmatprep.subr.bf16.mxu0 %v344
    %445 = vmatpush1.bf16.msra.mxu0 %v343
    %446 = vmatprep.subr.bf16.mxu0 %v336
    %447 = vmatpush1.bf16.msra.mxu0 %v335
    %448 = vmatprep.subr.bf16.mxu0 %v328
    %449 = vmatpush1.bf16.msra.mxu0 %v327
    %450 = vmatprep.subr.bf16.mxu0 0
    %451 = vmatpush2.bf16.msra.mxu0 0
    %452 = vmatprep.subr.bf16.mxu0 0
    %453 = vmatpush2.bf16.msra.mxu0 0
    %454 = vmatprep.subr.bf16.mxu0 0
    %455 = vmatpush2.bf16.msra.mxu0 0
    %456 = vmatprep.subr.bf16.mxu0 0
    %457 = vmatpush2.bf16.msra.mxu0 0
    %458 = vmatprep.subr.bf16.mxu0 0
    %459 = vmatpush2.bf16.msra.mxu0 0
    %460 = vmatprep.subr.bf16.mxu0 0
    %461 = vmatpush2.bf16.msra.mxu0 0
    %462 = vmatprep.subr.bf16.mxu0 0
    %463 = vmatpush2.bf16.msra.mxu0 0
    %464 = vmatprep.subr.bf16.mxu0 0
    %465 = vmatpush2.bf16.msra.mxu0 0
    %466 = vmatprep.mubr.bf16.mxu0 0
    %467 = vmatmul.mubr.bf16.gmra.mxu0 %v391
    %v468 = vpop.f32.mrf.mxu0
    %v469 = vadd.f32 0.0, %v468
    %v470 = vpop.f32.mrf.mxu0
    %v471 = vadd.f32 0.0, %v470
    %v472 = vpop.f32.mrf.mxu0
    %v473 = vpop.f32.mrf.mxu0
    %474 = vdwg.mxu0
    %475 = vmatprep.subr.bf16.mxu0 0
    %476 = vmatpush1.bf16.msra.mxu0 0
    %477 = vmatprep.subr.bf16.mxu0 0
    %478 = vmatpush1.bf16.msra.mxu0 0
    %479 = vmatprep.subr.bf16.mxu0 0
    %480 = vmatpush1.bf16.msra.mxu0 0
    %481 = vmatprep.subr.bf16.mxu0 0
    %482 = vmatpush1.bf16.msra.mxu0 0
    %483 = vmatprep.subr.bf16.mxu0 %v354
    %484 = vmatpush1.bf16.msra.mxu0 %v353
    %485 = vmatprep.subr.bf16.mxu0 %v346
    %486 = vmatpush1.bf16.msra.mxu0 %v345
    %487 = vmatprep.subr.bf16.mxu0 %v338
    %488 = vmatpush1.bf16.msra.mxu0 %v337
    %489 = vmatprep.subr.bf16.mxu0 %v330
    %490 = vmatpush1.bf16.msra.mxu0 %v329
    %491 = vmatprep.subr.bf16.mxu0 0
    %492 = vmatpush2.bf16.msra.mxu0 0
    %493 = vmatprep.subr.bf16.mxu0 0
    %494 = vmatpush2.bf16.msra.mxu0 0
    %495 = vmatprep.subr.bf16.mxu0 0
    %496 = vmatpush2.bf16.msra.mxu0 0
    %497 = vmatprep.subr.bf16.mxu0 0
    %498 = vmatpush2.bf16.msra.mxu0 0
    %499 = vmatprep.subr.bf16.mxu0 0
    %500 = vmatpush2.bf16.msra.mxu0 0
    %501 = vmatprep.subr.bf16.mxu0 0
    %502 = vmatpush2.bf16.msra.mxu0 0
    %503 = vmatprep.subr.bf16.mxu0 0
    %504 = vmatpush2.bf16.msra.mxu0 0
    %505 = vmatprep.subr.bf16.mxu0 0
    %506 = vmatpush2.bf16.msra.mxu0 0
    %507 = vmatprep.mubr.bf16.mxu0 0
    %508 = vmatmul.mubr.bf16.gmra.mxu0 %v391
    %v509 = vpop.f32.mrf.mxu0
    %v510 = vadd.f32 0.0, %v509
    %v511 = vpop.f32.mrf.mxu0
    %v512 = vadd.f32 0.0, %v511
    %v513 = vpop.f32.mrf.mxu0
    %v514 = vpop.f32.mrf.mxu0
    %515 = vdwg.mxu0
    %516 = vmatprep.subr.bf16.mxu0 0
    %517 = vmatpush1.bf16.msra.mxu0 0
    %518 = vmatprep.subr.bf16.mxu0 0
    %519 = vmatpush1.bf16.msra.mxu0 0
    %520 = vmatprep.subr.bf16.mxu0 0
    %521 = vmatpush1.bf16.msra.mxu0 0
    %522 = vmatprep.subr.bf16.mxu0 0
    %523 = vmatpush1.bf16.msra.mxu0 0
    %524 = vmatprep.subr.bf16.mxu0 %v356
    %525 = vmatpush1.bf16.msra.mxu0 %v355
    %526 = vmatprep.subr.bf16.mxu0 %v348
    %527 = vmatpush1.bf16.msra.mxu0 %v347
    %528 = vmatprep.subr.bf16.mxu0 %v340
    %529 = vmatpush1.bf16.msra.mxu0 %v339
    %530 = vmatprep.subr.bf16.mxu0 %v332
    %531 = vmatpush1.bf16.msra.mxu0 %v331
    %532 = vmatprep.subr.bf16.mxu0 0
    %533 = vmatpush2.bf16.msra.mxu0 0
    %534 = vmatprep.subr.bf16.mxu0 0
    %535 = vmatpush2.bf16.msra.mxu0 0
    %536 = vmatprep.subr.bf16.mxu0 0
    %537 = vmatpush2.bf16.msra.mxu0 0
    %538 = vmatprep.subr.bf16.mxu0 0
    %539 = vmatpush2.bf16.msra.mxu0 0
    %540 = vmatprep.subr.bf16.mxu0 0
    %541 = vmatpush2.bf16.msra.mxu0 0
    %542 = vmatprep.subr.bf16.mxu0 0
    %543 = vmatpush2.bf16.msra.mxu0 0
    %544 = vmatprep.subr.bf16.mxu0 0
    %545 = vmatpush2.bf16.msra.mxu0 0
    %546 = vmatprep.subr.bf16.mxu0 0
    %547 = vmatpush2.bf16.msra.mxu0 0
    %548 = vmatprep.mubr.bf16.mxu0 0
    %549 = vmatmul.mubr.bf16.gmra.mxu0 %v391
    %v550 = vpop.f32.mrf.mxu0
    %v551 = vadd.f32 0.0, %v550
    %v552 = vpop.f32.mrf.mxu0
    %v553 = vadd.f32 0.0, %v552
    %v554 = vpop.f32.mrf.mxu0
    %v555 = vpop.f32.mrf.mxu0
    %556 = vdwg.mxu0
    %v557 = vld [vmem:[#allocation7] sm:$0xff]
    %v559 = vlaneseq
    %v560 = vshrl.u32 %v559, 7
    %v561 = vsub.s32 0, %v560
    %v562 = vrot.slane %v557, %v561
    %v563 = vlaneseq
    %v564 = vshrl.u32 %v563, 7
    %v565 = vsub.s32 1, %v564
    %v566 = vrot.slane %v557, %v565
    %v567 = vlaneseq
    %v568 = vshrl.u32 %v567, 7
    %v569 = vsub.s32 2, %v568
    %v570 = vrot.slane %v557, %v569
    %v571 = vlaneseq
    %v572 = vshrl.u32 %v571, 7
    %v573 = vsub.s32 3, %v572
    %v574 = vrot.slane %v557, %v573
    %v575 = vlaneseq
    %v576 = vshrl.u32 %v575, 7
    %v577 = vsub.s32 4, %v576
    %v578 = vrot.slane %v557, %v577
    %v579 = vlaneseq
    %v580 = vshrl.u32 %v579, 7
    %v581 = vsub.s32 5, %v580
    %v582 = vrot.slane %v557, %v581
    %v583 = vlaneseq
    %v584 = vshrl.u32 %v583, 7
    %v585 = vsub.s32 6, %v584
    %v586 = vrot.slane %v557, %v585
    %v587 = vlaneseq
    %v588 = vshrl.u32 %v587, 7
    %v589 = vsub.s32 7, %v588
    %v590 = vrot.slane %v557, %v589
    %vm599 = vcmp.eq.f32.partialorder %v428, %v562
    %vm600 = vcmp.eq.f32.partialorder %v430, %v566
    %vm601 = vcmp.eq.f32.partialorder %v469, %v570
    %vm602 = vcmp.eq.f32.partialorder %v471, %v574
    %vm603 = vcmp.eq.f32.partialorder %v510, %v578
    %vm604 = vcmp.eq.f32.partialorder %v512, %v582
    %vm605 = vcmp.eq.f32.partialorder %v551, %v586
    %vm606 = vcmp.eq.f32.partialorder %v553, %v590
    %v607 = vsel %vm599, 1, 0
    %v608 = vsel %vm600, 1, 0
    %v609 = vsel %vm601, 1, 0
    %v610 = vsel %vm602, 1, 0
    %v611 = vsel %vm603, 1, 0
    %v612 = vsel %vm604, 1, 0
    %v613 = vsel %vm605, 1, 0
    %v614 = vsel %vm606, 1, 0
    %v615 = vcvt.s32.f32 %v607
    %v616 = vcvt.s32.f32 %v608
    %v617 = vcvt.s32.f32 %v609
    %v618 = vcvt.s32.f32 %v610
    %v619 = vcvt.s32.f32 %v611
    %v620 = vcvt.s32.f32 %v612
    %v621 = vcvt.s32.f32 %v613
    %v622 = vcvt.s32.f32 %v614
    %v623 = vpack.c.bf16 %v615, %v615
    %v624 = vpack.c.bf16 %v616, %v616
    %v625 = vpack.c.bf16 %v617, %v617
    %v626 = vpack.c.bf16 %v618, %v618
    %v627 = vpack.c.bf16 %v619, %v619
    %v628 = vpack.c.bf16 %v620, %v620
    %v629 = vpack.c.bf16 %v621, %v621
    %v630 = vpack.c.bf16 %v622, %v622
    %v631 = vld [vmem:[#allocation8] sm:$0xff]
    %v632 = vld [vmem:[#allocation8 + $0x8] sm:$0xff]
    %v633 = vld [vmem:[#allocation8 + $0x10] sm:$0xff]
    %v634 = vld [vmem:[#allocation8 + $0x18] sm:$0xff]
    %v635 = vld [vmem:[#allocation8 + $0x20] sm:$0xff]
    %v636 = vld [vmem:[#allocation8 + $0x28] sm:$0xff]
    %v637 = vld [vmem:[#allocation8 + $0x30] sm:$0xff]
    %v638 = vld [vmem:[#allocation8 + $0x38] sm:$0xff]
    %v639 = vld [vmem:[#allocation8 + $0x40] sm:$0xff]
    %v640 = vld [vmem:[#allocation8 + $0x48] sm:$0xff]
    %v641 = vld [vmem:[#allocation8 + $0x50] sm:$0xff]
    %v642 = vld [vmem:[#allocation8 + $0x58] sm:$0xff]
    %v643 = vld [vmem:[#allocation8 + $0x60] sm:$0xff]
    %v644 = vld [vmem:[#allocation8 + $0x68] sm:$0xff]
    %v645 = vld [vmem:[#allocation8 + $0x70] sm:$0xff]
    %v646 = vld [vmem:[#allocation8 + $0x78] sm:$0xff]
    %v647 = vld [vmem:[#allocation8 + $0x80] sm:$0xff]
    %v648 = vld [vmem:[#allocation8 + $0x88] sm:$0xff]
    %v649 = vld [vmem:[#allocation8 + $0x90] sm:$0xff]
    %v650 = vld [vmem:[#allocation8 + $0x98] sm:$0xff]
    %v651 = vld [vmem:[#allocation8 + $0xa0] sm:$0xff]
    %v652 = vld [vmem:[#allocation8 + $0xa8] sm:$0xff]
    %v653 = vld [vmem:[#allocation8 + $0xb0] sm:$0xff]
    %v654 = vld [vmem:[#allocation8 + $0xb8] sm:$0xff]
    %v655 = vld [vmem:[#allocation8 + $0xc0] sm:$0xff]
    %v656 = vld [vmem:[#allocation8 + $0xc8] sm:$0xff]
    %v657 = vld [vmem:[#allocation8 + $0xd0] sm:$0xff]
    %v658 = vld [vmem:[#allocation8 + $0xd8] sm:$0xff]
    %v659 = vld [vmem:[#allocation8 + $0xe0] sm:$0xff]
    %v660 = vld [vmem:[#allocation8 + $0xe8] sm:$0xff]
    %v661 = vld [vmem:[#allocation8 + $0xf0] sm:$0xff]
    %v662 = vld [vmem:[#allocation8 + $0xf8] sm:$0xff]
    %v663 = vld [vmem:[#allocation8 + $0x100] sm:$0xff]
    %v664 = vld [vmem:[#allocation8 + $0x108] sm:$0xff]
    %v665 = vld [vmem:[#allocation8 + $0x110] sm:$0xff]
    %v666 = vld [vmem:[#allocation8 + $0x118] sm:$0xff]
    %v667 = vld [vmem:[#allocation8 + $0x120] sm:$0xff]
    %v668 = vld [vmem:[#allocation8 + $0x128] sm:$0xff]
    %v669 = vld [vmem:[#allocation8 + $0x130] sm:$0xff]
    %v670 = vld [vmem:[#allocation8 + $0x138] sm:$0xff]
    %v671 = vld [vmem:[#allocation8 + $0x140] sm:$0xff]
    %v672 = vld [vmem:[#allocation8 + $0x148] sm:$0xff]
    %v673 = vld [vmem:[#allocation8 + $0x150] sm:$0xff]
    %v674 = vld [vmem:[#allocation8 + $0x158] sm:$0xff]
    %v675 = vld [vmem:[#allocation8 + $0x160] sm:$0xff]
    %v676 = vld [vmem:[#allocation8 + $0x168] sm:$0xff]
    %v677 = vld [vmem:[#allocation8 + $0x170] sm:$0xff]
    %v678 = vld [vmem:[#allocation8 + $0x178] sm:$0xff]
    %v679 = vld [vmem:[#allocation8 + $0x180] sm:$0xff]
    %v680 = vld [vmem:[#allocation8 + $0x188] sm:$0xff]
    %v681 = vld [vmem:[#allocation8 + $0x190] sm:$0xff]
    %v682 = vld [vmem:[#allocation8 + $0x198] sm:$0xff]
    %v683 = vld [vmem:[#allocation8 + $0x1a0] sm:$0xff]
    %v684 = vld [vmem:[#allocation8 + $0x1a8] sm:$0xff]
    %v685 = vld [vmem:[#allocation8 + $0x1b0] sm:$0xff]
    %v686 = vld [vmem:[#allocation8 + $0x1b8] sm:$0xff]
    %v687 = vld [vmem:[#allocation8 + $0x1c0] sm:$0xff]
    %v688 = vld [vmem:[#allocation8 + $0x1c8] sm:$0xff]
    %v689 = vld [vmem:[#allocation8 + $0x1d0] sm:$0xff]
    %v690 = vld [vmem:[#allocation8 + $0x1d8] sm:$0xff]
    %v691 = vld [vmem:[#allocation8 + $0x1e0] sm:$0xff]
    %v692 = vld [vmem:[#allocation8 + $0x1e8] sm:$0xff]
    %v693 = vld [vmem:[#allocation8 + $0x1f0] sm:$0xff]
    %v694 = vld [vmem:[#allocation8 + $0x1f8] sm:$0xff]
    %v695 = vld [vmem:[#allocation8 + $0x200] sm:$0xff]
    %v696 = vld [vmem:[#allocation8 + $0x208] sm:$0xff]
    %v697 = vld [vmem:[#allocation8 + $0x210] sm:$0xff]
    %v698 = vld [vmem:[#allocation8 + $0x218] sm:$0xff]
    %v699 = vld [vmem:[#allocation8 + $0x220] sm:$0xff]
    %v700 = vld [vmem:[#allocation8 + $0x228] sm:$0xff]
    %v701 = vld [vmem:[#allocation8 + $0x230] sm:$0xff]
    %v702 = vld [vmem:[#allocation8 + $0x238] sm:$0xff]
    %v703 = vld [vmem:[#allocation8 + $0x240] sm:$0xff]
    %v704 = vld [vmem:[#allocation8 + $0x248] sm:$0xff]
    %v705 = vld [vmem:[#allocation8 + $0x250] sm:$0xff]
    %v706 = vld [vmem:[#allocation8 + $0x258] sm:$0xff]
    %v707 = vld [vmem:[#allocation8 + $0x260] sm:$0xff]
    %v708 = vld [vmem:[#allocation8 + $0x268] sm:$0xff]
    %v709 = vld [vmem:[#allocation8 + $0x270] sm:$0xff]
    %v710 = vld [vmem:[#allocation8 + $0x278] sm:$0xff]
    %v711 = vld [vmem:[#allocation8 + $0x280] sm:$0xff]
    %v712 = vld [vmem:[#allocation8 + $0x288] sm:$0xff]
    %v713 = vld [vmem:[#allocation8 + $0x290] sm:$0xff]
    %v714 = vld [vmem:[#allocation8 + $0x298] sm:$0xff]
    %v715 = vld [vmem:[#allocation8 + $0x2a0] sm:$0xff]
    %v716 = vld [vmem:[#allocation8 + $0x2a8] sm:$0xff]
    %v717 = vld [vmem:[#allocation8 + $0x2b0] sm:$0xff]
    %v718 = vld [vmem:[#allocation8 + $0x2b8] sm:$0xff]
    %v719 = vld [vmem:[#allocation8 + $0x2c0] sm:$0xff]
    %v720 = vld [vmem:[#allocation8 + $0x2c8] sm:$0xff]
    %v721 = vld [vmem:[#allocation8 + $0x2d0] sm:$0xff]
    %v722 = vld [vmem:[#allocation8 + $0x2d8] sm:$0xff]
    %v723 = vld [vmem:[#allocation8 + $0x2e0] sm:$0xff]
    %v724 = vld [vmem:[#allocation8 + $0x2e8] sm:$0xff]
    %v725 = vld [vmem:[#allocation8 + $0x2f0] sm:$0xff]
    %v726 = vld [vmem:[#allocation8 + $0x2f8] sm:$0xff]
    %v727 = vld [vmem:[#allocation8 + $0x300] sm:$0xff]
    %v728 = vld [vmem:[#allocation8 + $0x308] sm:$0xff]
    %v729 = vld [vmem:[#allocation8 + $0x310] sm:$0xff]
    %v730 = vld [vmem:[#allocation8 + $0x318] sm:$0xff]
    %v731 = vld [vmem:[#allocation8 + $0x320] sm:$0xff]
    %v732 = vld [vmem:[#allocation8 + $0x328] sm:$0xff]
    %v733 = vld [vmem:[#allocation8 + $0x330] sm:$0xff]
    %v734 = vld [vmem:[#allocation8 + $0x338] sm:$0xff]
    %v735 = vld [vmem:[#allocation8 + $0x340] sm:$0xff]
    %v736 = vld [vmem:[#allocation8 + $0x348] sm:$0xff]
    %v737 = vld [vmem:[#allocation8 + $0x350] sm:$0xff]
    %v738 = vld [vmem:[#allocation8 + $0x358] sm:$0xff]
    %v739 = vld [vmem:[#allocation8 + $0x360] sm:$0xff]
    %v740 = vld [vmem:[#allocation8 + $0x368] sm:$0xff]
    %v741 = vld [vmem:[#allocation8 + $0x370] sm:$0xff]
    %v742 = vld [vmem:[#allocation8 + $0x378] sm:$0xff]
    %v743 = vld [vmem:[#allocation8 + $0x380] sm:$0xff]
    %v744 = vld [vmem:[#allocation8 + $0x388] sm:$0xff]
    %v745 = vld [vmem:[#allocation8 + $0x390] sm:$0xff]
    %v746 = vld [vmem:[#allocation8 + $0x398] sm:$0xff]
    %v747 = vld [vmem:[#allocation8 + $0x3a0] sm:$0xff]
    %v748 = vld [vmem:[#allocation8 + $0x3a8] sm:$0xff]
    %v749 = vld [vmem:[#allocation8 + $0x3b0] sm:$0xff]
    %v750 = vld [vmem:[#allocation8 + $0x3b8] sm:$0xff]
    %v751 = vld [vmem:[%s4] sm:$0x3]
    %v753 = vlaneseq
    %v754 = vshrl.u32 %v753, 7
    %v755 = vsub.s32 0, %v754
    %v756 = vrot.slane %v751, %v755
    %v757 = vlaneseq
    %v758 = vshrl.u32 %v757, 7
    %v759 = vsub.s32 1, %v758
    %v760 = vrot.slane %v751, %v759
    %v883 = vunpack.c.l.b16 %v631
    %v884 = vunpack.c.h.b16 %v631
    %v885 = vunpack.c.l.b16 %v632
    %v886 = vunpack.c.h.b16 %v632
    %v887 = vunpack.c.l.b16 %v633
    %v888 = vunpack.c.h.b16 %v633
    %v889 = vunpack.c.l.b16 %v634
    %v890 = vunpack.c.h.b16 %v634
    %v891 = vunpack.c.l.b16 %v635
    %v892 = vunpack.c.h.b16 %v635
    %v893 = vunpack.c.l.b16 %v636
    %v894 = vunpack.c.h.b16 %v636
    %v895 = vunpack.c.l.b16 %v637
    %v896 = vunpack.c.h.b16 %v637
    %v897 = vunpack.c.l.b16 %v638
    %v898 = vunpack.c.h.b16 %v638
    %v899 = vunpack.c.l.b16 %v639
    %v900 = vunpack.c.h.b16 %v639
    %v901 = vunpack.c.l.b16 %v640
    %v902 = vunpack.c.h.b16 %v640
    %v903 = vunpack.c.l.b16 %v641
    %v904 = vunpack.c.h.b16 %v641
    %v905 = vunpack.c.l.b16 %v642
    %v906 = vunpack.c.h.b16 %v642
    %v907 = vunpack.c.l.b16 %v643
    %v908 = vunpack.c.h.b16 %v643
    %v909 = vunpack.c.l.b16 %v644
    %v910 = vunpack.c.h.b16 %v644
    %v911 = vunpack.c.l.b16 %v645
    %v912 = vunpack.c.h.b16 %v645
    %v913 = vunpack.c.l.b16 %v646
    %v914 = vunpack.c.h.b16 %v646
    %v915 = vunpack.c.l.b16 %v647
    %v916 = vunpack.c.h.b16 %v647
    %v917 = vunpack.c.l.b16 %v648
    %v918 = vunpack.c.h.b16 %v648
    %v919 = vunpack.c.l.b16 %v649
    %v920 = vunpack.c.h.b16 %v649
    %v921 = vunpack.c.l.b16 %v650
    %v922 = vunpack.c.h.b16 %v650
    %v923 = vunpack.c.l.b16 %v651
    %v924 = vunpack.c.h.b16 %v651
    %v925 = vunpack.c.l.b16 %v652
    %v926 = vunpack.c.h.b16 %v652
    %v927 = vunpack.c.l.b16 %v653
    %v928 = vunpack.c.h.b16 %v653
    %v929 = vunpack.c.l.b16 %v654
    %v930 = vunpack.c.h.b16 %v654
    %v931 = vunpack.c.l.b16 %v655
    %v932 = vunpack.c.h.b16 %v655
    %v933 = vunpack.c.l.b16 %v656
    %v934 = vunpack.c.h.b16 %v656
    %v935 = vunpack.c.l.b16 %v657
    %v936 = vunpack.c.h.b16 %v657
    %v937 = vunpack.c.l.b16 %v658
    %v938 = vunpack.c.h.b16 %v658
    %v939 = vunpack.c.l.b16 %v659
    %v940 = vunpack.c.h.b16 %v659
    %v941 = vunpack.c.l.b16 %v660
    %v942 = vunpack.c.h.b16 %v660
    %v943 = vunpack.c.l.b16 %v661
    %v944 = vunpack.c.h.b16 %v661
    %v945 = vunpack.c.l.b16 %v662
    %v946 = vunpack.c.h.b16 %v662
    %v947 = vunpack.c.l.b16 %v663
    %v948 = vunpack.c.h.b16 %v663
    %v949 = vunpack.c.l.b16 %v664
    %v950 = vunpack.c.h.b16 %v664
    %v951 = vunpack.c.l.b16 %v665
    %v952 = vunpack.c.h.b16 %v665
    %v953 = vunpack.c.l.b16 %v666
    %v954 = vunpack.c.h.b16 %v666
    %v955 = vunpack.c.l.b16 %v667
    %v956 = vunpack.c.h.b16 %v667
    %v957 = vunpack.c.l.b16 %v668
    %v958 = vunpack.c.h.b16 %v668
    %v959 = vunpack.c.l.b16 %v669
    %v960 = vunpack.c.h.b16 %v669
    %v961 = vunpack.c.l.b16 %v670
    %v962 = vunpack.c.h.b16 %v670
    %v963 = vunpack.c.l.b16 %v671
    %v964 = vunpack.c.h.b16 %v671
    %v965 = vunpack.c.l.b16 %v672
    %v966 = vunpack.c.h.b16 %v672
    %v967 = vunpack.c.l.b16 %v673
    %v968 = vunpack.c.h.b16 %v673
    %v969 = vunpack.c.l.b16 %v674
    %v970 = vunpack.c.h.b16 %v674
    %v971 = vunpack.c.l.b16 %v675
    %v972 = vunpack.c.h.b16 %v675
    %v973 = vunpack.c.l.b16 %v676
    %v974 = vunpack.c.h.b16 %v676
    %v975 = vunpack.c.l.b16 %v677
    %v976 = vunpack.c.h.b16 %v677
    %v977 = vunpack.c.l.b16 %v678
    %v978 = vunpack.c.h.b16 %v678
    %v979 = vunpack.c.l.b16 %v679
    %v980 = vunpack.c.h.b16 %v679
    %v981 = vunpack.c.l.b16 %v680
    %v982 = vunpack.c.h.b16 %v680
    %v983 = vunpack.c.l.b16 %v681
    %v984 = vunpack.c.h.b16 %v681
    %v985 = vunpack.c.l.b16 %v682
    %v986 = vunpack.c.h.b16 %v682
    %v987 = vunpack.c.l.b16 %v683
    %v988 = vunpack.c.h.b16 %v683
    %v989 = vunpack.c.l.b16 %v684
    %v990 = vunpack.c.h.b16 %v684
    %v991 = vunpack.c.l.b16 %v685
    %v992 = vunpack.c.h.b16 %v685
    %v993 = vunpack.c.l.b16 %v686
    %v994 = vunpack.c.h.b16 %v686
    %v995 = vunpack.c.l.b16 %v687
    %v996 = vunpack.c.h.b16 %v687
    %v997 = vunpack.c.l.b16 %v688
    %v998 = vunpack.c.h.b16 %v688
    %v999 = vunpack.c.l.b16 %v689
    %v1000 = vunpack.c.h.b16 %v689
    %v1001 = vunpack.c.l.b16 %v690
    %v1002 = vunpack.c.h.b16 %v690
    %v1003 = vunpack.c.l.b16 %v691
    %v1004 = vunpack.c.h.b16 %v691
    %v1005 = vunpack.c.l.b16 %v692
    %v1006 = vunpack.c.h.b16 %v692
    %v1007 = vunpack.c.l.b16 %v693
    %v1008 = vunpack.c.h.b16 %v693
    %v1009 = vunpack.c.l.b16 %v694
    %v1010 = vunpack.c.h.b16 %v694
    %v1011 = vunpack.c.l.b16 %v695
    %v1012 = vunpack.c.h.b16 %v695
    %v1013 = vunpack.c.l.b16 %v696
    %v1014 = vunpack.c.h.b16 %v696
    %v1015 = vunpack.c.l.b16 %v697
    %v1016 = vunpack.c.h.b16 %v697
    %v1017 = vunpack.c.l.b16 %v698
    %v1018 = vunpack.c.h.b16 %v698
    %v1019 = vunpack.c.l.b16 %v699
    %v1020 = vunpack.c.h.b16 %v699
    %v1021 = vunpack.c.l.b16 %v700
    %v1022 = vunpack.c.h.b16 %v700
    %v1023 = vunpack.c.l.b16 %v701
    %v1024 = vunpack.c.h.b16 %v701
    %v1025 = vunpack.c.l.b16 %v702
    %v1026 = vunpack.c.h.b16 %v702
    %v1027 = vunpack.c.l.b16 %v703
    %v1028 = vunpack.c.h.b16 %v703
    %v1029 = vunpack.c.l.b16 %v704
    %v1030 = vunpack.c.h.b16 %v704
    %v1031 = vunpack.c.l.b16 %v705
    %v1032 = vunpack.c.h.b16 %v705
    %v1033 = vunpack.c.l.b16 %v706
    %v1034 = vunpack.c.h.b16 %v706
    %v1035 = vunpack.c.l.b16 %v707
    %v1036 = vunpack.c.h.b16 %v707
    %v1037 = vunpack.c.l.b16 %v708
    %v1038 = vunpack.c.h.b16 %v708
    %v1039 = vunpack.c.l.b16 %v709
    %v1040 = vunpack.c.h.b16 %v709
    %v1041 = vunpack.c.l.b16 %v710
    %v1042 = vunpack.c.h.b16 %v710
    %v1043 = vunpack.c.l.b16 %v711
    %v1044 = vunpack.c.h.b16 %v711
    %v1045 = vunpack.c.l.b16 %v712
    %v1046 = vunpack.c.h.b16 %v712
    %v1047 = vunpack.c.l.b16 %v713
    %v1048 = vunpack.c.h.b16 %v713
    %v1049 = vunpack.c.l.b16 %v714
    %v1050 = vunpack.c.h.b16 %v714
    %v1051 = vunpack.c.l.b16 %v715
    %v1052 = vunpack.c.h.b16 %v715
    %v1053 = vunpack.c.l.b16 %v716
    %v1054 = vunpack.c.h.b16 %v716
    %v1055 = vunpack.c.l.b16 %v717
    %v1056 = vunpack.c.h.b16 %v717
    %v1057 = vunpack.c.l.b16 %v718
    %v1058 = vunpack.c.h.b16 %v718
    %v1059 = vunpack.c.l.b16 %v719
    %v1060 = vunpack.c.h.b16 %v719
    %v1061 = vunpack.c.l.b16 %v720
    %v1062 = vunpack.c.h.b16 %v720
    %v1063 = vunpack.c.l.b16 %v721
    %v1064 = vunpack.c.h.b16 %v721
    %v1065 = vunpack.c.l.b16 %v722
    %v1066 = vunpack.c.h.b16 %v722
    %v1067 = vunpack.c.l.b16 %v723
    %v1068 = vunpack.c.h.b16 %v723
    %v1069 = vunpack.c.l.b16 %v724
    %v1070 = vunpack.c.h.b16 %v724
    %v1071 = vunpack.c.l.b16 %v725
    %v1072 = vunpack.c.h.b16 %v725
    %v1073 = vunpack.c.l.b16 %v726
    %v1074 = vunpack.c.h.b16 %v726
    %v1075 = vunpack.c.l.b16 %v727
    %v1076 = vunpack.c.h.b16 %v727
    %v1077 = vunpack.c.l.b16 %v728
    %v1078 = vunpack.c.h.b16 %v728
    %v1079 = vunpack.c.l.b16 %v729
    %v1080 = vunpack.c.h.b16 %v729
    %v1081 = vunpack.c.l.b16 %v730
    %v1082 = vunpack.c.h.b16 %v730
    %v1083 = vunpack.c.l.b16 %v731
    %v1084 = vunpack.c.h.b16 %v731
    %v1085 = vunpack.c.l.b16 %v732
    %v1086 = vunpack.c.h.b16 %v732
    %v1087 = vunpack.c.l.b16 %v733
    %v1088 = vunpack.c.h.b16 %v733
    %v1089 = vunpack.c.l.b16 %v734
    %v1090 = vunpack.c.h.b16 %v734
    %v1091 = vunpack.c.l.b16 %v735
    %v1092 = vunpack.c.h.b16 %v735
    %v1093 = vunpack.c.l.b16 %v736
    %v1094 = vunpack.c.h.b16 %v736
    %v1095 = vunpack.c.l.b16 %v737
    %v1096 = vunpack.c.h.b16 %v737
    %v1097 = vunpack.c.l.b16 %v738
    %v1098 = vunpack.c.h.b16 %v738
    %v1099 = vunpack.c.l.b16 %v739
    %v1100 = vunpack.c.h.b16 %v739
    %v1101 = vunpack.c.l.b16 %v740
    %v1102 = vunpack.c.h.b16 %v740
    %v1103 = vunpack.c.l.b16 %v741
    %v1104 = vunpack.c.h.b16 %v741
    %v1105 = vunpack.c.l.b16 %v742
    %v1106 = vunpack.c.h.b16 %v742
    %v1107 = vunpack.c.l.b16 %v743
    %v1108 = vunpack.c.h.b16 %v743
    %v1109 = vunpack.c.l.b16 %v744
    %v1110 = vunpack.c.h.b16 %v744
    %v1111 = vunpack.c.l.b16 %v745
    %v1112 = vunpack.c.h.b16 %v745
    %v1113 = vunpack.c.l.b16 %v746
    %v1114 = vunpack.c.h.b16 %v746
    %v1115 = vunpack.c.l.b16 %v747
    %v1116 = vunpack.c.h.b16 %v747
    %v1117 = vunpack.c.l.b16 %v748
    %v1118 = vunpack.c.h.b16 %v748
    %v1119 = vunpack.c.l.b16 %v749
    %v1120 = vunpack.c.h.b16 %v749
    %v1121 = vunpack.c.l.b16 %v750
    %v1122 = vunpack.c.h.b16 %v750
    %v1123 = vpack.c.b16 %v885, %v883
    %v1124 = vpack.c.b16 %v886, %v884
    %v1125 = vpack.c.b16 %v889, %v887
    %v1126 = vpack.c.b16 %v890, %v888
    %v1127 = vpack.c.b16 %v893, %v891
    %v1128 = vpack.c.b16 %v894, %v892
    %v1129 = vpack.c.b16 %v897, %v895
    %v1130 = vpack.c.b16 %v898, %v896
    %v1131 = vpack.c.b16 %v901, %v899
    %v1132 = vpack.c.b16 %v902, %v900
    %v1133 = vpack.c.b16 %v905, %v903
    %v1134 = vpack.c.b16 %v906, %v904
    %v1135 = vpack.c.b16 %v909, %v907
    %v1136 = vpack.c.b16 %v910, %v908
    %v1137 = vpack.c.b16 %v913, %v911
    %v1138 = vpack.c.b16 %v914, %v912
    %v1139 = vpack.c.b16 %v917, %v915
    %v1140 = vpack.c.b16 %v918, %v916
    %v1141 = vpack.c.b16 %v921, %v919
    %v1142 = vpack.c.b16 %v922, %v920
    %v1143 = vpack.c.b16 %v925, %v923
    %v1144 = vpack.c.b16 %v926, %v924
    %v1145 = vpack.c.b16 %v929, %v927
    %v1146 = vpack.c.b16 %v930, %v928
    %v1147 = vpack.c.b16 %v933, %v931
    %v1148 = vpack.c.b16 %v934, %v932
    %v1149 = vpack.c.b16 %v937, %v935
    %v1150 = vpack.c.b16 %v938, %v936
    %v1151 = vpack.c.b16 %v941, %v939
    %v1152 = vpack.c.b16 %v942, %v940
    %v1153 = vpack.c.b16 %v945, %v943
    %v1154 = vpack.c.b16 %v946, %v944
    %v1155 = vpack.c.b16 %v949, %v947
    %v1156 = vpack.c.b16 %v950, %v948
    %v1157 = vpack.c.b16 %v953, %v951
    %v1158 = vpack.c.b16 %v954, %v952
    %v1159 = vpack.c.b16 %v957, %v955
    %v1160 = vpack.c.b16 %v958, %v956
    %v1161 = vpack.c.b16 %v961, %v959
    %v1162 = vpack.c.b16 %v962, %v960
    %v1163 = vpack.c.b16 %v965, %v963
    %v1164 = vpack.c.b16 %v966, %v964
    %v1165 = vpack.c.b16 %v969, %v967
    %v1166 = vpack.c.b16 %v970, %v968
    %v1167 = vpack.c.b16 %v973, %v971
    %v1168 = vpack.c.b16 %v974, %v972
    %v1169 = vpack.c.b16 %v977, %v975
    %v1170 = vpack.c.b16 %v978, %v976
    %v1171 = vpack.c.b16 %v981, %v979
    %v1172 = vpack.c.b16 %v982, %v980
    %v1173 = vpack.c.b16 %v985, %v983
    %v1174 = vpack.c.b16 %v986, %v984
    %v1175 = vpack.c.b16 %v989, %v987
    %v1176 = vpack.c.b16 %v990, %v988
    %v1177 = vpack.c.b16 %v993, %v991
    %v1178 = vpack.c.b16 %v994, %v992
    %v1179 = vpack.c.b16 %v997, %v995
    %v1180 = vpack.c.b16 %v998, %v996
    %v1181 = vpack.c.b16 %v1001, %v999
    %v1182 = vpack.c.b16 %v1002, %v1000
    %v1183 = vpack.c.b16 %v1005, %v1003
    %v1184 = vpack.c.b16 %v1006, %v1004
    %v1185 = vpack.c.b16 %v1009, %v1007
    %v1186 = vpack.c.b16 %v1010, %v1008
    %v1187 = vpack.c.b16 %v1013, %v1011
    %v1188 = vpack.c.b16 %v1014, %v1012
    %v1189 = vpack.c.b16 %v1017, %v1015
    %v1190 = vpack.c.b16 %v1018, %v1016
    %v1191 = vpack.c.b16 %v1021, %v1019
    %v1192 = vpack.c.b16 %v1022, %v1020
    %v1193 = vpack.c.b16 %v1025, %v1023
    %v1194 = vpack.c.b16 %v1026, %v1024
    %v1195 = vpack.c.b16 %v1029, %v1027
    %v1196 = vpack.c.b16 %v1030, %v1028
    %v1197 = vpack.c.b16 %v1033, %v1031
    %v1198 = vpack.c.b16 %v1034, %v1032
    %v1199 = vpack.c.b16 %v1037, %v1035
    %v1200 = vpack.c.b16 %v1038, %v1036
    %v1201 = vpack.c.b16 %v1041, %v1039
    %v1202 = vpack.c.b16 %v1042, %v1040
    %v1203 = vpack.c.b16 %v1045, %v1043
    %v1204 = vpack.c.b16 %v1046, %v1044
    %v1205 = vpack.c.b16 %v1049, %v1047
    %v1206 = vpack.c.b16 %v1050, %v1048
    %v1207 = vpack.c.b16 %v1053, %v1051
    %v1208 = vpack.c.b16 %v1054, %v1052
    %v1209 = vpack.c.b16 %v1057, %v1055
    %v1210 = vpack.c.b16 %v1058, %v1056
    %v1211 = vpack.c.b16 %v1061, %v1059
    %v1212 = vpack.c.b16 %v1062, %v1060
    %v1213 = vpack.c.b16 %v1065, %v1063
    %v1214 = vpack.c.b16 %v1066, %v1064
    %v1215 = vpack.c.b16 %v1069, %v1067
    %v1216 = vpack.c.b16 %v1070, %v1068
    %v1217 = vpack.c.b16 %v1073, %v1071
    %v1218 = vpack.c.b16 %v1074, %v1072
    %v1219 = vpack.c.b16 %v1077, %v1075
    %v1220 = vpack.c.b16 %v1078, %v1076
    %v1221 = vpack.c.b16 %v1081, %v1079
    %v1222 = vpack.c.b16 %v1082, %v1080
    %v1223 = vpack.c.b16 %v1085, %v1083
    %v1224 = vpack.c.b16 %v1086, %v1084
    %v1225 = vpack.c.b16 %v1089, %v1087
    %v1226 = vpack.c.b16 %v1090, %v1088
    %v1227 = vpack.c.b16 %v1093, %v1091
    %v1228 = vpack.c.b16 %v1094, %v1092
    %v1229 = vpack.c.b16 %v1097, %v1095
    %v1230 = vpack.c.b16 %v1098, %v1096
    %v1231 = vpack.c.b16 %v1101, %v1099
    %v1232 = vpack.c.b16 %v1102, %v1100
    %v1233 = vpack.c.b16 %v1105, %v1103
    %v1234 = vpack.c.b16 %v1106, %v1104
    %v1235 = vpack.c.b16 %v1109, %v1107
    %v1236 = vpack.c.b16 %v1110, %v1108
    %v1237 = vpack.c.b16 %v1113, %v1111
    %v1238 = vpack.c.b16 %v1114, %v1112
    %v1239 = vpack.c.b16 %v1117, %v1115
    %v1240 = vpack.c.b16 %v1118, %v1116
    %v1241 = vpack.c.b16 %v1121, %v1119
    %v1242 = vpack.c.b16 %v1122, %v1120
    %v1364 = vsel %vm389, %v630, 0
    %1366 = vmatprep.subr.bf16.mxu0 %v1138
    %1367 = vmatpush1.bf16.msra.mxu0 %v1137
    %1368 = vmatprep.subr.bf16.mxu0 %v1136
    %1369 = vmatpush1.bf16.msra.mxu0 %v1135
    %1370 = vmatprep.subr.bf16.mxu0 %v1134
    %1371 = vmatpush1.bf16.msra.mxu0 %v1133
    %1372 = vmatprep.subr.bf16.mxu0 %v1132
    %1373 = vmatpush1.bf16.msra.mxu0 %v1131
    %1374 = vmatprep.subr.bf16.mxu0 %v1130
    %1375 = vmatpush1.bf16.msra.mxu0 %v1129
    %1376 = vmatprep.subr.bf16.mxu0 %v1128
    %1377 = vmatpush1.bf16.msra.mxu0 %v1127
    %1378 = vmatprep.subr.bf16.mxu0 %v1126
    %1379 = vmatpush1.bf16.msra.mxu0 %v1125
    %1380 = vmatprep.subr.bf16.mxu0 %v1124
    %1381 = vmatpush1.bf16.msra.mxu0 %v1123
    %1382 = vmatprep.subr.bf16.mxu0 %v1154
    %1383 = vmatpush2.bf16.msra.mxu0 %v1153
    %1384 = vmatprep.subr.bf16.mxu0 %v1152
    %1385 = vmatpush2.bf16.msra.mxu0 %v1151
    %1386 = vmatprep.subr.bf16.mxu0 %v1150
    %1387 = vmatpush2.bf16.msra.mxu0 %v1149
    %1388 = vmatprep.subr.bf16.mxu0 %v1148
    %1389 = vmatpush2.bf16.msra.mxu0 %v1147
    %1390 = vmatprep.subr.bf16.mxu0 %v1146
    %1391 = vmatpush2.bf16.msra.mxu0 %v1145
    %1392 = vmatprep.subr.bf16.mxu0 %v1144
    %1393 = vmatpush2.bf16.msra.mxu0 %v1143
    %1394 = vmatprep.subr.bf16.mxu0 %v1142
    %1395 = vmatpush2.bf16.msra.mxu0 %v1141
    %1396 = vmatprep.subr.bf16.mxu0 %v1140
    %1397 = vmatpush2.bf16.msra.mxu0 %v1139
    %1398 = vmatprep.mubr.bf16.mxu0 %v624
    %1399 = vmatmul.mubr.bf16.gmra.mxu0 %v623
    %v1400 = vpop.f32.mrf.mxu0
    %v1401 = vadd.f32 %v756, %v1400
    %v1402 = vpop.f32.mrf.mxu0
    %v1403 = vadd.f32 %v760, %v1402
    %v1404 = vpop.f32.mrf.mxu0
    %v1405 = vpop.f32.mrf.mxu0
    %1406 = vdwg.mxu0
    %1407 = vmatprep.subr.bf16.mxu0 %v1170
    %1408 = vmatpush1.bf16.msra.mxu0 %v1169
    %1409 = vmatprep.subr.bf16.mxu0 %v1168
    %1410 = vmatpush1.bf16.msra.mxu0 %v1167
    %1411 = vmatprep.subr.bf16.mxu0 %v1166
    %1412 = vmatpush1.bf16.msra.mxu0 %v1165
    %1413 = vmatprep.subr.bf16.mxu0 %v1164
    %1414 = vmatpush1.bf16.msra.mxu0 %v1163
    %1415 = vmatprep.subr.bf16.mxu0 %v1162
    %1416 = vmatpush1.bf16.msra.mxu0 %v1161
    %1417 = vmatprep.subr.bf16.mxu0 %v1160
    %1418 = vmatpush1.bf16.msra.mxu0 %v1159
    %1419 = vmatprep.subr.bf16.mxu0 %v1158
    %1420 = vmatpush1.bf16.msra.mxu0 %v1157
    %1421 = vmatprep.subr.bf16.mxu0 %v1156
    %1422 = vmatpush1.bf16.msra.mxu0 %v1155
    %1423 = vmatprep.subr.bf16.mxu0 %v1186
    %1424 = vmatpush2.bf16.msra.mxu0 %v1185
    %1425 = vmatprep.subr.bf16.mxu0 %v1184
    %1426 = vmatpush2.bf16.msra.mxu0 %v1183
    %1427 = vmatprep.subr.bf16.mxu0 %v1182
    %1428 = vmatpush2.bf16.msra.mxu0 %v1181
    %1429 = vmatprep.subr.bf16.mxu0 %v1180
    %1430 = vmatpush2.bf16.msra.mxu0 %v1179
    %1431 = vmatprep.subr.bf16.mxu0 %v1178
    %1432 = vmatpush2.bf16.msra.mxu0 %v1177
    %1433 = vmatprep.subr.bf16.mxu0 %v1176
    %1434 = vmatpush2.bf16.msra.mxu0 %v1175
    %1435 = vmatprep.subr.bf16.mxu0 %v1174
    %1436 = vmatpush2.bf16.msra.mxu0 %v1173
    %1437 = vmatprep.subr.bf16.mxu0 %v1172
    %1438 = vmatpush2.bf16.msra.mxu0 %v1171
    %1439 = vmatprep.mubr.bf16.mxu0 %v626
    %1440 = vmatmul.mubr.bf16.gmra.mxu0 %v625
    %v1441 = vpop.f32.mrf.mxu0
    %v1442 = vadd.f32 %v1401, %v1441
    %v1443 = vpop.f32.mrf.mxu0
    %v1444 = vadd.f32 %v1403, %v1443
    %v1445 = vpop.f32.mrf.mxu0
    %v1446 = vpop.f32.mrf.mxu0
    %1447 = vdwg.mxu0
    %1448 = vmatprep.subr.bf16.mxu0 %v1202
    %1449 = vmatpush1.bf16.msra.mxu0 %v1201
    %1450 = vmatprep.subr.bf16.mxu0 %v1200
    %1451 = vmatpush1.bf16.msra.mxu0 %v1199
    %1452 = vmatprep.subr.bf16.mxu0 %v1198
    %1453 = vmatpush1.bf16.msra.mxu0 %v1197
    %1454 = vmatprep.subr.bf16.mxu0 %v1196
    %1455 = vmatpush1.bf16.msra.mxu0 %v1195
    %1456 = vmatprep.subr.bf16.mxu0 %v1194
    %1457 = vmatpush1.bf16.msra.mxu0 %v1193
    %1458 = vmatprep.subr.bf16.mxu0 %v1192
    %1459 = vmatpush1.bf16.msra.mxu0 %v1191
    %1460 = vmatprep.subr.bf16.mxu0 %v1190
    %1461 = vmatpush1.bf16.msra.mxu0 %v1189
    %1462 = vmatprep.subr.bf16.mxu0 %v1188
    %1463 = vmatpush1.bf16.msra.mxu0 %v1187
    %1464 = vmatprep.subr.bf16.mxu0 %v1218
    %1465 = vmatpush2.bf16.msra.mxu0 %v1217
    %1466 = vmatprep.subr.bf16.mxu0 %v1216
    %1467 = vmatpush2.bf16.msra.mxu0 %v1215
    %1468 = vmatprep.subr.bf16.mxu0 %v1214
    %1469 = vmatpush2.bf16.msra.mxu0 %v1213
    %1470 = vmatprep.subr.bf16.mxu0 %v1212
    %1471 = vmatpush2.bf16.msra.mxu0 %v1211
    %1472 = vmatprep.subr.bf16.mxu0 %v1210
    %1473 = vmatpush2.bf16.msra.mxu0 %v1209
    %1474 = vmatprep.subr.bf16.mxu0 %v1208
    %1475 = vmatpush2.bf16.msra.mxu0 %v1207
    %1476 = vmatprep.subr.bf16.mxu0 %v1206
    %1477 = vmatpush2.bf16.msra.mxu0 %v1205
    %1478 = vmatprep.subr.bf16.mxu0 %v1204
    %1479 = vmatpush2.bf16.msra.mxu0 %v1203
    %1480 = vmatprep.mubr.bf16.mxu0 %v628
    %1481 = vmatmul.mubr.bf16.gmra.mxu0 %v627
    %v1482 = vpop.f32.mrf.mxu0
    %v1483 = vadd.f32 %v1442, %v1482
    %v1484 = vpop.f32.mrf.mxu0
    %v1485 = vadd.f32 %v1444, %v1484
    %v1486 = vpop.f32.mrf.mxu0
    %v1487 = vpop.f32.mrf.mxu0
    %1488 = vdwg.mxu0
    %1489 = vmatprep.subr.bf16.mxu0 %v1234
    %1490 = vmatpush1.bf16.msra.mxu0 %v1233
    %1491 = vmatprep.subr.bf16.mxu0 %v1232
    %1492 = vmatpush1.bf16.msra.mxu0 %v1231
    %1493 = vmatprep.subr.bf16.mxu0 %v1230
    %1494 = vmatpush1.bf16.msra.mxu0 %v1229
    %1495 = vmatprep.subr.bf16.mxu0 %v1228
    %1496 = vmatpush1.bf16.msra.mxu0 %v1227
    %1497 = vmatprep.subr.bf16.mxu0 %v1226
    %1498 = vmatpush1.bf16.msra.mxu0 %v1225
    %1499 = vmatprep.subr.bf16.mxu0 %v1224
    %1500 = vmatpush1.bf16.msra.mxu0 %v1223
    %1501 = vmatprep.subr.bf16.mxu0 %v1222
    %1502 = vmatpush1.bf16.msra.mxu0 %v1221
    %1503 = vmatprep.subr.bf16.mxu0 %v1220
    %1504 = vmatpush1.bf16.msra.mxu0 %v1219
    %1505 = vmatprep.subr.bf16.mxu0 0
    %1506 = vmatpush2.bf16.msra.mxu0 0
    %1507 = vmatprep.subr.bf16.mxu0 0
    %1508 = vmatpush2.bf16.msra.mxu0 0
    %1509 = vmatprep.subr.bf16.mxu0 0
    %1510 = vmatpush2.bf16.msra.mxu0 0
    %1511 = vmatprep.subr.bf16.mxu0 0
    %1512 = vmatpush2.bf16.msra.mxu0 0
    %1513 = vmatprep.subr.bf16.mxu0 %v1242
    %1514 = vmatpush2.bf16.msra.mxu0 %v1241
    %1515 = vmatprep.subr.bf16.mxu0 %v1240
    %1516 = vmatpush2.bf16.msra.mxu0 %v1239
    %1517 = vmatprep.subr.bf16.mxu0 %v1238
    %1518 = vmatpush2.bf16.msra.mxu0 %v1237
    %1519 = vmatprep.subr.bf16.mxu0 %v1236
    %1520 = vmatpush2.bf16.msra.mxu0 %v1235
    %1521 = vmatprep.mubr.bf16.mxu0 %v1364
    %1522 = vmatmul.mubr.bf16.gmra.mxu0 %v629
    %v1523 = vpop.f32.mrf.mxu0
    %v1524 = vadd.f32 %v1483, %v1523
    %v1525 = vpop.f32.mrf.mxu0
    %v1526 = vadd.f32 %v1485, %v1525
    %v1527 = vpop.f32.mrf.mxu0
    %v1528 = vpop.f32.mrf.mxu0
    %1529 = vdwg.mxu0
    %vm1530 = vcmp.gt.f32.partialorder %v1524, 0.0
    %vm1531 = vcmp.gt.f32.partialorder %v1526, 0.0
    %v1532 = vmin.f32 %v1524, 0.0
    %v1533 = vmin.f32 %v1526, 0.0
    %v1534 = vmul.f32 %v1532, 1.442695
    %v1535 = vpow.pop %v1534
    %v1536 = vmul.f32 %v1533, 1.442695
    %v1537 = vpow.pop %v1536
    %v1538 = vsub.f32 %v1535, 1.0
    %v1539 = vsub.f32 %v1537, 1.0
    %v1540 = vsel %vm1530, %v1524, %v1538
    %v1541 = vsel %vm1531, %v1526, %v1539
    %v1542 = vpack.c.bf16 %v1540, %v1540
    %v1543 = vpack.c.bf16 %v1541, %v1541
    %v1544 = vld [vmem:[#allocation10] sm:$0xff]
    %v1545 = vld [vmem:[#allocation10 + $0x8] sm:$0xff]
    %v1546 = vld [vmem:[#allocation10 + $0x10] sm:$0xff]
    %v1547 = vld [vmem:[#allocation10 + $0x18] sm:$0xff]
    %v1548 = vld [vmem:[#allocation10 + $0x20] sm:$0xff]
    %v1549 = vld [vmem:[#allocation10 + $0x28] sm:$0xff]
    %v1550 = vld [vmem:[#allocation10 + $0x30] sm:$0xff]
    %v1551 = vld [vmem:[#allocation10 + $0x38] sm:$0xff]
    %v1552 = vld [vmem:[#allocation10 + $0x40] sm:$0xff]
    %v1553 = vld [vmem:[#allocation10 + $0x48] sm:$0xff]
    %v1554 = vld [vmem:[#allocation10 + $0x50] sm:$0xff]
    %v1555 = vld [vmem:[#allocation10 + $0x58] sm:$0xff]
    %v1556 = vld [vmem:[#allocation10 + $0x60] sm:$0xff]
    %v1557 = vld [vmem:[#allocation10 + $0x68] sm:$0xff]
    %v1558 = vld [vmem:[#allocation10 + $0x70] sm:$0xff]
    %v1559 = vld [vmem:[#allocation10 + $0x78] sm:$0xff]
    %v1560 = vld [vmem:[#allocation10 + $0x80] sm:$0xff]
    %v1561 = vld [vmem:[#allocation10 + $0x88] sm:$0xff]
    %v1562 = vld [vmem:[#allocation10 + $0x90] sm:$0xff]
    %v1563 = vld [vmem:[#allocation10 + $0x98] sm:$0xff]
    %v1564 = vld [vmem:[#allocation10 + $0xa0] sm:$0xff]
    %v1565 = vld [vmem:[#allocation10 + $0xa8] sm:$0xff]
    %v1566 = vld [vmem:[#allocation10 + $0xb0] sm:$0xff]
    %v1567 = vld [vmem:[#allocation10 + $0xb8] sm:$0xff]
    %v1568 = vld [vmem:[#allocation10 + $0xc0] sm:$0xff]
    %v1569 = vld [vmem:[#allocation10 + $0xc8] sm:$0xff]
    %v1570 = vld [vmem:[#allocation10 + $0xd0] sm:$0xff]
    %v1571 = vld [vmem:[#allocation10 + $0xd8] sm:$0xff]
    %v1572 = vld [vmem:[#allocation10 + $0xe0] sm:$0xff]
    %v1573 = vld [vmem:[#allocation10 + $0xe8] sm:$0xff]
    %v1574 = vld [vmem:[#allocation10 + $0xf0] sm:$0xff]
    %v1575 = vld [vmem:[#allocation10 + $0xf8] sm:$0xff]
    %v1576 = vld [vmem:[%s6] sm:$0x3]
    %v1578 = vlaneseq
    %v1579 = vshrl.u32 %v1578, 7
    %v1580 = vsub.s32 0, %v1579
    %v1581 = vrot.slane %v1576, %v1580
    %v1582 = vlaneseq
    %v1583 = vshrl.u32 %v1582, 7
    %v1584 = vsub.s32 1, %v1583
    %v1585 = vrot.slane %v1576, %v1584
    %v1620 = vunpack.c.l.b16 %v1544
    %v1621 = vunpack.c.h.b16 %v1544
    %v1622 = vunpack.c.l.b16 %v1545
    %v1623 = vunpack.c.h.b16 %v1545
    %v1624 = vunpack.c.l.b16 %v1546
    %v1625 = vunpack.c.h.b16 %v1546
    %v1626 = vunpack.c.l.b16 %v1547
    %v1627 = vunpack.c.h.b16 %v1547
    %v1628 = vunpack.c.l.b16 %v1548
    %v1629 = vunpack.c.h.b16 %v1548
    %v1630 = vunpack.c.l.b16 %v1549
    %v1631 = vunpack.c.h.b16 %v1549
    %v1632 = vunpack.c.l.b16 %v1550
    %v1633 = vunpack.c.h.b16 %v1550
    %v1634 = vunpack.c.l.b16 %v1551
    %v1635 = vunpack.c.h.b16 %v1551
    %v1636 = vunpack.c.l.b16 %v1552
    %v1637 = vunpack.c.h.b16 %v1552
    %v1638 = vunpack.c.l.b16 %v1553
    %v1639 = vunpack.c.h.b16 %v1553
    %v1640 = vunpack.c.l.b16 %v1554
    %v1641 = vunpack.c.h.b16 %v1554
    %v1642 = vunpack.c.l.b16 %v1555
    %v1643 = vunpack.c.h.b16 %v1555
    %v1644 = vunpack.c.l.b16 %v1556
    %v1645 = vunpack.c.h.b16 %v1556
    %v1646 = vunpack.c.l.b16 %v1557
    %v1647 = vunpack.c.h.b16 %v1557
    %v1648 = vunpack.c.l.b16 %v1558
    %v1649 = vunpack.c.h.b16 %v1558
    %v1650 = vunpack.c.l.b16 %v1559
    %v1651 = vunpack.c.h.b16 %v1559
    %v1652 = vunpack.c.l.b16 %v1560
    %v1653 = vunpack.c.h.b16 %v1560
    %v1654 = vunpack.c.l.b16 %v1561
    %v1655 = vunpack.c.h.b16 %v1561
    %v1656 = vunpack.c.l.b16 %v1562
    %v1657 = vunpack.c.h.b16 %v1562
    %v1658 = vunpack.c.l.b16 %v1563
    %v1659 = vunpack.c.h.b16 %v1563
    %v1660 = vunpack.c.l.b16 %v1564
    %v1661 = vunpack.c.h.b16 %v1564
    %v1662 = vunpack.c.l.b16 %v1565
    %v1663 = vunpack.c.h.b16 %v1565
    %v1664 = vunpack.c.l.b16 %v1566
    %v1665 = vunpack.c.h.b16 %v1566
    %v1666 = vunpack.c.l.b16 %v1567
    %v1667 = vunpack.c.h.b16 %v1567
    %v1668 = vunpack.c.l.b16 %v1568
    %v1669 = vunpack.c.h.b16 %v1568
    %v1670 = vunpack.c.l.b16 %v1569
    %v1671 = vunpack.c.h.b16 %v1569
    %v1672 = vunpack.c.l.b16 %v1570
    %v1673 = vunpack.c.h.b16 %v1570
    %v1674 = vunpack.c.l.b16 %v1571
    %v1675 = vunpack.c.h.b16 %v1571
    %v1676 = vunpack.c.l.b16 %v1572
    %v1677 = vunpack.c.h.b16 %v1572
    %v1678 = vunpack.c.l.b16 %v1573
    %v1679 = vunpack.c.h.b16 %v1573
    %v1680 = vunpack.c.l.b16 %v1574
    %v1681 = vunpack.c.h.b16 %v1574
    %v1682 = vunpack.c.l.b16 %v1575
    %v1683 = vunpack.c.h.b16 %v1575
    %v1684 = vpack.c.b16 %v1622, %v1620
    %v1685 = vpack.c.b16 %v1623, %v1621
    %v1686 = vpack.c.b16 %v1626, %v1624
    %v1687 = vpack.c.b16 %v1627, %v1625
    %v1688 = vpack.c.b16 %v1630, %v1628
    %v1689 = vpack.c.b16 %v1631, %v1629
    %v1690 = vpack.c.b16 %v1634, %v1632
    %v1691 = vpack.c.b16 %v1635, %v1633
    %v1692 = vpack.c.b16 %v1638, %v1636
    %v1693 = vpack.c.b16 %v1639, %v1637
    %v1694 = vpack.c.b16 %v1642, %v1640
    %v1695 = vpack.c.b16 %v1643, %v1641
    %v1696 = vpack.c.b16 %v1646, %v1644
    %v1697 = vpack.c.b16 %v1647, %v1645
    %v1698 = vpack.c.b16 %v1650, %v1648
    %v1699 = vpack.c.b16 %v1651, %v1649
    %v1700 = vpack.c.b16 %v1654, %v1652
    %v1701 = vpack.c.b16 %v1655, %v1653
    %v1702 = vpack.c.b16 %v1658, %v1656
    %v1703 = vpack.c.b16 %v1659, %v1657
    %v1704 = vpack.c.b16 %v1662, %v1660
    %v1705 = vpack.c.b16 %v1663, %v1661
    %v1706 = vpack.c.b16 %v1666, %v1664
    %v1707 = vpack.c.b16 %v1667, %v1665
    %v1708 = vpack.c.b16 %v1670, %v1668
    %v1709 = vpack.c.b16 %v1671, %v1669
    %v1710 = vpack.c.b16 %v1674, %v1672
    %v1711 = vpack.c.b16 %v1675, %v1673
    %v1712 = vpack.c.b16 %v1678, %v1676
    %v1713 = vpack.c.b16 %v1679, %v1677
    %v1714 = vpack.c.b16 %v1682, %v1680
    %v1715 = vpack.c.b16 %v1683, %v1681
    %1748 = vmatprep.subr.bf16.mxu0 %v1699
    %1749 = vmatpush1.bf16.msra.mxu0 %v1698
    %1750 = vmatprep.subr.bf16.mxu0 %v1697
    %1751 = vmatpush1.bf16.msra.mxu0 %v1696
    %1752 = vmatprep.subr.bf16.mxu0 %v1695
    %1753 = vmatpush1.bf16.msra.mxu0 %v1694
    %1754 = vmatprep.subr.bf16.mxu0 %v1693
    %1755 = vmatpush1.bf16.msra.mxu0 %v1692
    %1756 = vmatprep.subr.bf16.mxu0 %v1691
    %1757 = vmatpush1.bf16.msra.mxu0 %v1690
    %1758 = vmatprep.subr.bf16.mxu0 %v1689
    %1759 = vmatpush1.bf16.msra.mxu0 %v1688
    %1760 = vmatprep.subr.bf16.mxu0 %v1687
    %1761 = vmatpush1.bf16.msra.mxu0 %v1686
    %1762 = vmatprep.subr.bf16.mxu0 %v1685
    %1763 = vmatpush1.bf16.msra.mxu0 %v1684
    %1764 = vmatprep.subr.bf16.mxu0 %v1715
    %1765 = vmatpush2.bf16.msra.mxu0 %v1714
    %1766 = vmatprep.subr.bf16.mxu0 %v1713
    %1767 = vmatpush2.bf16.msra.mxu0 %v1712
    %1768 = vmatprep.subr.bf16.mxu0 %v1711
    %1769 = vmatpush2.bf16.msra.mxu0 %v1710
    %1770 = vmatprep.subr.bf16.mxu0 %v1709
    %1771 = vmatpush2.bf16.msra.mxu0 %v1708
    %1772 = vmatprep.subr.bf16.mxu0 %v1707
    %1773 = vmatpush2.bf16.msra.mxu0 %v1706
    %1774 = vmatprep.subr.bf16.mxu0 %v1705
    %1775 = vmatpush2.bf16.msra.mxu0 %v1704
    %1776 = vmatprep.subr.bf16.mxu0 %v1703
    %1777 = vmatpush2.bf16.msra.mxu0 %v1702
    %1778 = vmatprep.subr.bf16.mxu0 %v1701
    %1779 = vmatpush2.bf16.msra.mxu0 %v1700
    %1780 = vmatprep.mubr.bf16.mxu0 %v1543
    %1781 = vmatmul.mubr.bf16.gmra.mxu0 %v1542
    %v1782 = vpop.f32.mrf.mxu0
    %v1783 = vadd.f32 %v1581, %v1782
    %v1784 = vpop.f32.mrf.mxu0
    %v1785 = vadd.f32 %v1585, %v1784
    %v1786 = vpop.f32.mrf.mxu0
    %v1787 = vpop.f32.mrf.mxu0
    %1788 = vdwg.mxu0
    %vm1789 = vcmp.gt.f32.partialorder %v1783, 0.0
    %vm1790 = vcmp.gt.f32.partialorder %v1785, 0.0
    %v1791 = vmin.f32 %v1783, 0.0
    %v1792 = vmin.f32 %v1785, 0.0
    %v1793 = vmul.f32 %v1791, 1.442695
    %v1794 = vpow.pop %v1793
    %v1795 = vmul.f32 %v1792, 1.442695
    %v1796 = vpow.pop %v1795
    %v1797 = vsub.f32 %v1794, 1.0
    %v1798 = vsub.f32 %v1796, 1.0
    %v1799 = vsel %vm1789, %v1783, %v1797
    %v1800 = vsel %vm1790, %v1785, %v1798
    %v1801 = vpack.c.bf16 %v1799, %v1799
    %v1802 = vpack.c.bf16 %v1800, %v1800
    %v1803 = vld [vmem:[#allocation11] sm:$0xff]
    %v1804 = vld [vmem:[#allocation11 + $0x8] sm:$0xff]
    %v1805 = vld [vmem:[#allocation11 + $0x10] sm:$0xff]
    %v1806 = vld [vmem:[#allocation11 + $0x18] sm:$0xff]
    %v1807 = vld [vmem:[#allocation11 + $0x20] sm:$0xff]
    %v1808 = vld [vmem:[#allocation11 + $0x28] sm:$0xff]
    %v1809 = vld [vmem:[#allocation11 + $0x30] sm:$0xff]
    %v1810 = vld [vmem:[#allocation11 + $0x38] sm:$0xff]
    %v1811 = vld [vmem:[#allocation11 + $0x40] sm:$0xff]
    %v1812 = vld [vmem:[#allocation11 + $0x48] sm:$0xff]
    %v1813 = vld [vmem:[#allocation11 + $0x50] sm:$0xff]
    %v1814 = vld [vmem:[#allocation11 + $0x58] sm:$0xff]
    %v1815 = vld [vmem:[#allocation11 + $0x60] sm:$0xff]
    %v1816 = vld [vmem:[#allocation11 + $0x68] sm:$0xff]
    %v1817 = vld [vmem:[#allocation11 + $0x70] sm:$0xff]
    %v1818 = vld [vmem:[#allocation11 + $0x78] sm:$0xff]
    %v1819 = vld [vmem:[#allocation11 + $0x80] sm:$0xff]
    %v1820 = vld [vmem:[#allocation11 + $0x88] sm:$0xff]
    %v1821 = vld [vmem:[#allocation11 + $0x90] sm:$0xff]
    %v1822 = vld [vmem:[#allocation11 + $0x98] sm:$0xff]
    %v1823 = vld [vmem:[#allocation11 + $0xa0] sm:$0xff]
    %v1824 = vld [vmem:[#allocation11 + $0xa8] sm:$0xff]
    %v1825 = vld [vmem:[#allocation11 + $0xb0] sm:$0xff]
    %v1826 = vld [vmem:[#allocation11 + $0xb8] sm:$0xff]
    %v1827 = vld [vmem:[#allocation11 + $0xc0] sm:$0xff]
    %v1828 = vld [vmem:[#allocation11 + $0xc8] sm:$0xff]
    %v1829 = vld [vmem:[#allocation11 + $0xd0] sm:$0xff]
    %v1830 = vld [vmem:[#allocation11 + $0xd8] sm:$0xff]
    %v1831 = vld [vmem:[#allocation11 + $0xe0] sm:$0xff]
    %v1832 = vld [vmem:[#allocation11 + $0xe8] sm:$0xff]
    %v1833 = vld [vmem:[#allocation11 + $0xf0] sm:$0xff]
    %v1834 = vld [vmem:[#allocation11 + $0xf8] sm:$0xff]
    %v1835 = vld [vmem:[%s8] sm:$0x3]
    %v1837 = vlaneseq
    %v1838 = vshrl.u32 %v1837, 7
    %v1839 = vsub.s32 0, %v1838
    %v1840 = vrot.slane %v1835, %v1839
    %v1841 = vlaneseq
    %v1842 = vshrl.u32 %v1841, 7
    %v1843 = vsub.s32 1, %v1842
    %v1844 = vrot.slane %v1835, %v1843
    %v1879 = vunpack.c.l.b16 %v1803
    %v1880 = vunpack.c.h.b16 %v1803
    %v1881 = vunpack.c.l.b16 %v1804
    %v1882 = vunpack.c.h.b16 %v1804
    %v1883 = vunpack.c.l.b16 %v1805
    %v1884 = vunpack.c.h.b16 %v1805
    %v1885 = vunpack.c.l.b16 %v1806
    %v1886 = vunpack.c.h.b16 %v1806
    %v1887 = vunpack.c.l.b16 %v1807
    %v1888 = vunpack.c.h.b16 %v1807
    %v1889 = vunpack.c.l.b16 %v1808
    %v1890 = vunpack.c.h.b16 %v1808
    %v1891 = vunpack.c.l.b16 %v1809
    %v1892 = vunpack.c.h.b16 %v1809
    %v1893 = vunpack.c.l.b16 %v1810
    %v1894 = vunpack.c.h.b16 %v1810
    %v1895 = vunpack.c.l.b16 %v1811
    %v1896 = vunpack.c.h.b16 %v1811
    %v1897 = vunpack.c.l.b16 %v1812
    %v1898 = vunpack.c.h.b16 %v1812
    %v1899 = vunpack.c.l.b16 %v1813
    %v1900 = vunpack.c.h.b16 %v1813
    %v1901 = vunpack.c.l.b16 %v1814
    %v1902 = vunpack.c.h.b16 %v1814
    %v1903 = vunpack.c.l.b16 %v1815
    %v1904 = vunpack.c.h.b16 %v1815
    %v1905 = vunpack.c.l.b16 %v1816
    %v1906 = vunpack.c.h.b16 %v1816
    %v1907 = vunpack.c.l.b16 %v1817
    %v1908 = vunpack.c.h.b16 %v1817
    %v1909 = vunpack.c.l.b16 %v1818
    %v1910 = vunpack.c.h.b16 %v1818
    %v1911 = vunpack.c.l.b16 %v1819
    %v1912 = vunpack.c.h.b16 %v1819
    %v1913 = vunpack.c.l.b16 %v1820
    %v1914 = vunpack.c.h.b16 %v1820
    %v1915 = vunpack.c.l.b16 %v1821
    %v1916 = vunpack.c.h.b16 %v1821
    %v1917 = vunpack.c.l.b16 %v1822
    %v1918 = vunpack.c.h.b16 %v1822
    %v1919 = vunpack.c.l.b16 %v1823
    %v1920 = vunpack.c.h.b16 %v1823
    %v1921 = vunpack.c.l.b16 %v1824
    %v1922 = vunpack.c.h.b16 %v1824
    %v1923 = vunpack.c.l.b16 %v1825
    %v1924 = vunpack.c.h.b16 %v1825
    %v1925 = vunpack.c.l.b16 %v1826
    %v1926 = vunpack.c.h.b16 %v1826
    %v1927 = vunpack.c.l.b16 %v1827
    %v1928 = vunpack.c.h.b16 %v1827
    %v1929 = vunpack.c.l.b16 %v1828
    %v1930 = vunpack.c.h.b16 %v1828
    %v1931 = vunpack.c.l.b16 %v1829
    %v1932 = vunpack.c.h.b16 %v1829
    %v1933 = vunpack.c.l.b16 %v1830
    %v1934 = vunpack.c.h.b16 %v1830
    %v1935 = vunpack.c.l.b16 %v1831
    %v1936 = vunpack.c.h.b16 %v1831
    %v1937 = vunpack.c.l.b16 %v1832
    %v1938 = vunpack.c.h.b16 %v1832
    %v1939 = vunpack.c.l.b16 %v1833
    %v1940 = vunpack.c.h.b16 %v1833
    %v1941 = vunpack.c.l.b16 %v1834
    %v1942 = vunpack.c.h.b16 %v1834
    %v1943 = vpack.c.b16 %v1881, %v1879
    %v1944 = vpack.c.b16 %v1882, %v1880
    %v1945 = vpack.c.b16 %v1885, %v1883
    %v1946 = vpack.c.b16 %v1886, %v1884
    %v1947 = vpack.c.b16 %v1889, %v1887
    %v1948 = vpack.c.b16 %v1890, %v1888
    %v1949 = vpack.c.b16 %v1893, %v1891
    %v1950 = vpack.c.b16 %v1894, %v1892
    %v1951 = vpack.c.b16 %v1897, %v1895
    %v1952 = vpack.c.b16 %v1898, %v1896
    %v1953 = vpack.c.b16 %v1901, %v1899
    %v1954 = vpack.c.b16 %v1902, %v1900
    %v1955 = vpack.c.b16 %v1905, %v1903
    %v1956 = vpack.c.b16 %v1906, %v1904
    %v1957 = vpack.c.b16 %v1909, %v1907
    %v1958 = vpack.c.b16 %v1910, %v1908
    %v1959 = vpack.c.b16 %v1913, %v1911
    %v1960 = vpack.c.b16 %v1914, %v1912
    %v1961 = vpack.c.b16 %v1917, %v1915
    %v1962 = vpack.c.b16 %v1918, %v1916
    %v1963 = vpack.c.b16 %v1921, %v1919
    %v1964 = vpack.c.b16 %v1922, %v1920
    %v1965 = vpack.c.b16 %v1925, %v1923
    %v1966 = vpack.c.b16 %v1926, %v1924
    %v1967 = vpack.c.b16 %v1929, %v1927
    %v1968 = vpack.c.b16 %v1930, %v1928
    %v1969 = vpack.c.b16 %v1933, %v1931
    %v1970 = vpack.c.b16 %v1934, %v1932
    %v1971 = vpack.c.b16 %v1937, %v1935
    %v1972 = vpack.c.b16 %v1938, %v1936
    %v1973 = vpack.c.b16 %v1941, %v1939
    %v1974 = vpack.c.b16 %v1942, %v1940
    %2007 = vmatprep.subr.bf16.mxu0 %v1958
    %2008 = vmatpush1.bf16.msra.mxu0 %v1957
    %2009 = vmatprep.subr.bf16.mxu0 %v1956
    %2010 = vmatpush1.bf16.msra.mxu0 %v1955
    %2011 = vmatprep.subr.bf16.mxu0 %v1954
    %2012 = vmatpush1.bf16.msra.mxu0 %v1953
    %2013 = vmatprep.subr.bf16.mxu0 %v1952
    %2014 = vmatpush1.bf16.msra.mxu0 %v1951
    %2015 = vmatprep.subr.bf16.mxu0 %v1950
    %2016 = vmatpush1.bf16.msra.mxu0 %v1949
    %2017 = vmatprep.subr.bf16.mxu0 %v1948
    %2018 = vmatpush1.bf16.msra.mxu0 %v1947
    %2019 = vmatprep.subr.bf16.mxu0 %v1946
    %2020 = vmatpush1.bf16.msra.mxu0 %v1945
    %2021 = vmatprep.subr.bf16.mxu0 %v1944
    %2022 = vmatpush1.bf16.msra.mxu0 %v1943
    %2023 = vmatprep.subr.bf16.mxu0 %v1974
    %2024 = vmatpush2.bf16.msra.mxu0 %v1973
    %2025 = vmatprep.subr.bf16.mxu0 %v1972
    %2026 = vmatpush2.bf16.msra.mxu0 %v1971
    %2027 = vmatprep.subr.bf16.mxu0 %v1970
    %2028 = vmatpush2.bf16.msra.mxu0 %v1969
    %2029 = vmatprep.subr.bf16.mxu0 %v1968
    %2030 = vmatpush2.bf16.msra.mxu0 %v1967
    %2031 = vmatprep.subr.bf16.mxu0 %v1966
    %2032 = vmatpush2.bf16.msra.mxu0 %v1965
    %2033 = vmatprep.subr.bf16.mxu0 %v1964
    %2034 = vmatpush2.bf16.msra.mxu0 %v1963
    %2035 = vmatprep.subr.bf16.mxu0 %v1962
    %2036 = vmatpush2.bf16.msra.mxu0 %v1961
    %2037 = vmatprep.subr.bf16.mxu0 %v1960
    %2038 = vmatpush2.bf16.msra.mxu0 %v1959
    %2039 = vmatprep.mubr.bf16.mxu0 %v1802
    %2040 = vmatmul.mubr.bf16.gmra.mxu0 %v1801
    %v2041 = vpop.f32.mrf.mxu0
    %v2042 = vadd.f32 %v1840, %v2041
    %v2043 = vpop.f32.mrf.mxu0
    %v2044 = vadd.f32 %v1844, %v2043
    %v2045 = vpop.f32.mrf.mxu0
    %v2046 = vpop.f32.mrf.mxu0
    %2047 = vdwg.mxu0
    %vm2048 = vcmp.gt.f32.partialorder %v2042, 0.0
    %vm2049 = vcmp.gt.f32.partialorder %v2044, 0.0
    %v2050 = vmin.f32 %v2042, 0.0
    %v2051 = vmin.f32 %v2044, 0.0
    %v2052 = vmul.f32 %v2050, 1.442695
    %v2053 = vpow.pop %v2052
    %v2054 = vmul.f32 %v2051, 1.442695
    %v2055 = vpow.pop %v2054
    %v2056 = vsub.f32 %v2053, 1.0
    %v2057 = vsub.f32 %v2055, 1.0
    %v2058 = vsel %vm2048, %v2042, %v2056
    %v2059 = vsel %vm2049, %v2044, %v2057
    %v2060 = vpack.c.bf16 %v2058, %v2058
    %v2061 = vpack.c.bf16 %v2059, %v2059
    %v2062 = vld [vmem:[#allocation13] sm:$0xff]
    %v2063 = vld [vmem:[#allocation13 + $0x8] sm:$0xff]
    %v2064 = vld [vmem:[#allocation13 + $0x10] sm:$0xff]
    %v2065 = vld [vmem:[#allocation13 + $0x18] sm:$0xff]
    %v2066 = vld [vmem:[#allocation13 + $0x20] sm:$0xff]
    %v2067 = vld [vmem:[#allocation13 + $0x28] sm:$0xff]
    %v2068 = vld [vmem:[#allocation13 + $0x30] sm:$0xff]
    %v2069 = vld [vmem:[#allocation13 + $0x38] sm:$0xff]
    %v2070 = vld [vmem:[#allocation13 + $0x40] sm:$0xff]
    %v2071 = vld [vmem:[#allocation13 + $0x48] sm:$0xff]
    %v2072 = vld [vmem:[#allocation13 + $0x50] sm:$0xff]
    %v2073 = vld [vmem:[#allocation13 + $0x58] sm:$0xff]
    %v2074 = vld [vmem:[#allocation13 + $0x60] sm:$0xff]
    %v2075 = vld [vmem:[#allocation13 + $0x68] sm:$0xff]
    %v2076 = vld [vmem:[#allocation13 + $0x70] sm:$0xff]
    %v2077 = vld [vmem:[#allocation13 + $0x78] sm:$0xff]
    %v2078 = vld [vmem:[#allocation13 + $0x80] sm:$0xff]
    %v2079 = vld [vmem:[#allocation13 + $0x88] sm:$0xff]
    %v2080 = vld [vmem:[#allocation13 + $0x90] sm:$0xff]
    %v2081 = vld [vmem:[#allocation13 + $0x98] sm:$0xff]
    %v2082 = vld [vmem:[#allocation13 + $0xa0] sm:$0xff]
    %v2083 = vld [vmem:[#allocation13 + $0xa8] sm:$0xff]
    %v2084 = vld [vmem:[#allocation13 + $0xb0] sm:$0xff]
    %v2085 = vld [vmem:[#allocation13 + $0xb8] sm:$0xff]
    %v2086 = vld [vmem:[#allocation13 + $0xc0] sm:$0xff]
    %v2087 = vld [vmem:[#allocation13 + $0xc8] sm:$0xff]
    %v2088 = vld [vmem:[#allocation13 + $0xd0] sm:$0xff]
    %v2089 = vld [vmem:[#allocation13 + $0xd8] sm:$0xff]
    %v2090 = vld [vmem:[#allocation13 + $0xe0] sm:$0xff]
    %v2091 = vld [vmem:[#allocation13 + $0xe8] sm:$0xff]
    %v2092 = vld [vmem:[#allocation13 + $0xf0] sm:$0xff]
    %v2093 = vld [vmem:[#allocation13 + $0xf8] sm:$0xff]
    %v2094 = vld [vmem:[%s10] sm:$0x3]
    %v2096 = vlaneseq
    %v2097 = vshrl.u32 %v2096, 7
    %v2098 = vsub.s32 0, %v2097
    %v2099 = vrot.slane %v2094, %v2098
    %v2100 = vlaneseq
    %v2101 = vshrl.u32 %v2100, 7
    %v2102 = vsub.s32 1, %v2101
    %v2103 = vrot.slane %v2094, %v2102
    %v2138 = vunpack.c.l.b16 %v2062
    %v2139 = vunpack.c.h.b16 %v2062
    %v2140 = vunpack.c.l.b16 %v2063
    %v2141 = vunpack.c.h.b16 %v2063
    %v2142 = vunpack.c.l.b16 %v2064
    %v2143 = vunpack.c.h.b16 %v2064
    %v2144 = vunpack.c.l.b16 %v2065
    %v2145 = vunpack.c.h.b16 %v2065
    %v2146 = vunpack.c.l.b16 %v2066
    %v2147 = vunpack.c.h.b16 %v2066
    %v2148 = vunpack.c.l.b16 %v2067
    %v2149 = vunpack.c.h.b16 %v2067
    %v2150 = vunpack.c.l.b16 %v2068
    %v2151 = vunpack.c.h.b16 %v2068
    %v2152 = vunpack.c.l.b16 %v2069
    %v2153 = vunpack.c.h.b16 %v2069
    %v2154 = vunpack.c.l.b16 %v2070
    %v2155 = vunpack.c.h.b16 %v2070
    %v2156 = vunpack.c.l.b16 %v2071
    %v2157 = vunpack.c.h.b16 %v2071
    %v2158 = vunpack.c.l.b16 %v2072
    %v2159 = vunpack.c.h.b16 %v2072
    %v2160 = vunpack.c.l.b16 %v2073
    %v2161 = vunpack.c.h.b16 %v2073
    %v2162 = vunpack.c.l.b16 %v2074
    %v2163 = vunpack.c.h.b16 %v2074
    %v2164 = vunpack.c.l.b16 %v2075
    %v2165 = vunpack.c.h.b16 %v2075
    %v2166 = vunpack.c.l.b16 %v2076
    %v2167 = vunpack.c.h.b16 %v2076
    %v2168 = vunpack.c.l.b16 %v2077
    %v2169 = vunpack.c.h.b16 %v2077
    %v2170 = vunpack.c.l.b16 %v2078
    %v2171 = vunpack.c.h.b16 %v2078
    %v2172 = vunpack.c.l.b16 %v2079
    %v2173 = vunpack.c.h.b16 %v2079
    %v2174 = vunpack.c.l.b16 %v2080
    %v2175 = vunpack.c.h.b16 %v2080
    %v2176 = vunpack.c.l.b16 %v2081
    %v2177 = vunpack.c.h.b16 %v2081
    %v2178 = vunpack.c.l.b16 %v2082
    %v2179 = vunpack.c.h.b16 %v2082
    %v2180 = vunpack.c.l.b16 %v2083
    %v2181 = vunpack.c.h.b16 %v2083
    %v2182 = vunpack.c.l.b16 %v2084
    %v2183 = vunpack.c.h.b16 %v2084
    %v2184 = vunpack.c.l.b16 %v2085
    %v2185 = vunpack.c.h.b16 %v2085
    %v2186 = vunpack.c.l.b16 %v2086
    %v2187 = vunpack.c.h.b16 %v2086
    %v2188 = vunpack.c.l.b16 %v2087
    %v2189 = vunpack.c.h.b16 %v2087
    %v2190 = vunpack.c.l.b16 %v2088
    %v2191 = vunpack.c.h.b16 %v2088
    %v2192 = vunpack.c.l.b16 %v2089
    %v2193 = vunpack.c.h.b16 %v2089
    %v2194 = vunpack.c.l.b16 %v2090
    %v2195 = vunpack.c.h.b16 %v2090
    %v2196 = vunpack.c.l.b16 %v2091
    %v2197 = vunpack.c.h.b16 %v2091
    %v2198 = vunpack.c.l.b16 %v2092
    %v2199 = vunpack.c.h.b16 %v2092
    %v2200 = vunpack.c.l.b16 %v2093
    %v2201 = vunpack.c.h.b16 %v2093
    %v2202 = vpack.c.b16 %v2140, %v2138
    %v2203 = vpack.c.b16 %v2141, %v2139
    %v2204 = vpack.c.b16 %v2144, %v2142
    %v2205 = vpack.c.b16 %v2145, %v2143
    %v2206 = vpack.c.b16 %v2148, %v2146
    %v2207 = vpack.c.b16 %v2149, %v2147
    %v2208 = vpack.c.b16 %v2152, %v2150
    %v2209 = vpack.c.b16 %v2153, %v2151
    %v2210 = vpack.c.b16 %v2156, %v2154
    %v2211 = vpack.c.b16 %v2157, %v2155
    %v2212 = vpack.c.b16 %v2160, %v2158
    %v2213 = vpack.c.b16 %v2161, %v2159
    %v2214 = vpack.c.b16 %v2164, %v2162
    %v2215 = vpack.c.b16 %v2165, %v2163
    %v2216 = vpack.c.b16 %v2168, %v2166
    %v2217 = vpack.c.b16 %v2169, %v2167
    %v2218 = vpack.c.b16 %v2172, %v2170
    %v2219 = vpack.c.b16 %v2173, %v2171
    %v2220 = vpack.c.b16 %v2176, %v2174
    %v2221 = vpack.c.b16 %v2177, %v2175
    %v2222 = vpack.c.b16 %v2180, %v2178
    %v2223 = vpack.c.b16 %v2181, %v2179
    %v2224 = vpack.c.b16 %v2184, %v2182
    %v2225 = vpack.c.b16 %v2185, %v2183
    %v2226 = vpack.c.b16 %v2188, %v2186
    %v2227 = vpack.c.b16 %v2189, %v2187
    %v2228 = vpack.c.b16 %v2192, %v2190
    %v2229 = vpack.c.b16 %v2193, %v2191
    %v2230 = vpack.c.b16 %v2196, %v2194
    %v2231 = vpack.c.b16 %v2197, %v2195
    %v2232 = vpack.c.b16 %v2200, %v2198
    %v2233 = vpack.c.b16 %v2201, %v2199
    %2266 = vmatprep.subr.bf16.mxu0 %v2217
    %2267 = vmatpush1.bf16.msra.mxu0 %v2216
    %2268 = vmatprep.subr.bf16.mxu0 %v2215
    %2269 = vmatpush1.bf16.msra.mxu0 %v2214
    %2270 = vmatprep.subr.bf16.mxu0 %v2213
    %2271 = vmatpush1.bf16.msra.mxu0 %v2212
    %2272 = vmatprep.subr.bf16.mxu0 %v2211
    %2273 = vmatpush1.bf16.msra.mxu0 %v2210
    %2274 = vmatprep.subr.bf16.mxu0 %v2209
    %2275 = vmatpush1.bf16.msra.mxu0 %v2208
    %2276 = vmatprep.subr.bf16.mxu0 %v2207
    %2277 = vmatpush1.bf16.msra.mxu0 %v2206
    %2278 = vmatprep.subr.bf16.mxu0 %v2205
    %2279 = vmatpush1.bf16.msra.mxu0 %v2204
    %2280 = vmatprep.subr.bf16.mxu0 %v2203
    %2281 = vmatpush1.bf16.msra.mxu0 %v2202
    %2282 = vmatprep.subr.bf16.mxu0 %v2233
    %2283 = vmatpush2.bf16.msra.mxu0 %v2232
    %2284 = vmatprep.subr.bf16.mxu0 %v2231
    %2285 = vmatpush2.bf16.msra.mxu0 %v2230
    %2286 = vmatprep.subr.bf16.mxu0 %v2229
    %2287 = vmatpush2.bf16.msra.mxu0 %v2228
    %2288 = vmatprep.subr.bf16.mxu0 %v2227
    %2289 = vmatpush2.bf16.msra.mxu0 %v2226
    %2290 = vmatprep.subr.bf16.mxu0 %v2225
    %2291 = vmatpush2.bf16.msra.mxu0 %v2224
    %2292 = vmatprep.subr.bf16.mxu0 %v2223
    %2293 = vmatpush2.bf16.msra.mxu0 %v2222
    %2294 = vmatprep.subr.bf16.mxu0 %v2221
    %2295 = vmatpush2.bf16.msra.mxu0 %v2220
    %2296 = vmatprep.subr.bf16.mxu0 %v2219
    %2297 = vmatpush2.bf16.msra.mxu0 %v2218
    %2298 = vmatprep.mubr.bf16.mxu0 %v2061
    %2299 = vmatmul.mubr.bf16.gmra.mxu0 %v2060
    %v2300 = vpop.f32.mrf.mxu0
    %v2301 = vadd.f32 %v2099, %v2300
    %v2302 = vpop.f32.mrf.mxu0
    %v2303 = vadd.f32 %v2103, %v2302
    %v2304 = vpop.f32.mrf.mxu0
    %v2305 = vpop.f32.mrf.mxu0
    %2306 = vdwg.mxu0
    %v2307 = vpack.c.bf16 %v2301, %v2301
    %v2308 = vpack.c.bf16 %v2303, %v2303
    %v2309 = vld [vmem:[#allocation14] sm:$0xff]
    %v2310 = vld [vmem:[#allocation14 + $0x8] sm:$0xff]
    %v2311 = vld [vmem:[#allocation14 + $0x10] sm:$0xff]
    %v2312 = vld [vmem:[#allocation14 + $0x18] sm:$0xff]
    %v2313 = vld [vmem:[#allocation14 + $0x20] sm:$0xff]
    %v2314 = vld [vmem:[#allocation14 + $0x28] sm:$0xff]
    %v2315 = vld [vmem:[#allocation14 + $0x30] sm:$0xff]
    %v2316 = vld [vmem:[#allocation14 + $0x38] sm:$0xff]
    %v2317 = vld [vmem:[#allocation14 + $0x40] sm:$0xff]
    %v2318 = vld [vmem:[#allocation14 + $0x48] sm:$0xff]
    %v2319 = vld [vmem:[#allocation14 + $0x50] sm:$0xff]
    %v2320 = vld [vmem:[#allocation14 + $0x58] sm:$0xff]
    %v2321 = vld [vmem:[#allocation14 + $0x60] sm:$0xff]
    %v2322 = vld [vmem:[#allocation14 + $0x68] sm:$0xff]
    %v2323 = vld [vmem:[#allocation14 + $0x70] sm:$0xff]
    %v2324 = vld [vmem:[#allocation14 + $0x78] sm:$0xff]
    %v2325 = vld [vmem:[#allocation14 + $0x80] sm:$0xff]
    %v2326 = vld [vmem:[#allocation14 + $0x88] sm:$0xff]
    %v2327 = vld [vmem:[#allocation14 + $0x90] sm:$0xff]
    %v2328 = vld [vmem:[#allocation14 + $0x98] sm:$0xff]
    %v2329 = vld [vmem:[#allocation14 + $0xa0] sm:$0xff]
    %v2330 = vld [vmem:[#allocation14 + $0xa8] sm:$0xff]
    %v2331 = vld [vmem:[#allocation14 + $0xb0] sm:$0xff]
    %v2332 = vld [vmem:[#allocation14 + $0xb8] sm:$0xff]
    %v2333 = vld [vmem:[#allocation14 + $0xc0] sm:$0xff]
    %v2334 = vld [vmem:[#allocation14 + $0xc8] sm:$0xff]
    %v2335 = vld [vmem:[#allocation14 + $0xd0] sm:$0xff]
    %v2336 = vld [vmem:[#allocation14 + $0xd8] sm:$0xff]
    %v2337 = vld [vmem:[#allocation14 + $0xe0] sm:$0xff]
    %v2338 = vld [vmem:[#allocation14 + $0xe8] sm:$0xff]
    %v2339 = vld [vmem:[#allocation14 + $0xf0] sm:$0xff]
    %v2340 = vld [vmem:[#allocation14 + $0xf8] sm:$0xff]
    %v2341 = vld [vmem:[%s12] sm:$0x3]
    %v2343 = vlaneseq
    %v2344 = vshrl.u32 %v2343, 7
    %v2345 = vsub.s32 0, %v2344
    %v2346 = vrot.slane %v2341, %v2345
    %v2347 = vlaneseq
    %v2348 = vshrl.u32 %v2347, 7
    %v2349 = vsub.s32 1, %v2348
    %v2350 = vrot.slane %v2341, %v2349
    %v2385 = vunpack.c.l.b16 %v2309
    %v2386 = vunpack.c.h.b16 %v2309
    %v2387 = vunpack.c.l.b16 %v2310
    %v2388 = vunpack.c.h.b16 %v2310
    %v2389 = vunpack.c.l.b16 %v2311
    %v2390 = vunpack.c.h.b16 %v2311
    %v2391 = vunpack.c.l.b16 %v2312
    %v2392 = vunpack.c.h.b16 %v2312
    %v2393 = vunpack.c.l.b16 %v2313
    %v2394 = vunpack.c.h.b16 %v2313
    %v2395 = vunpack.c.l.b16 %v2314
    %v2396 = vunpack.c.h.b16 %v2314
    %v2397 = vunpack.c.l.b16 %v2315
    %v2398 = vunpack.c.h.b16 %v2315
    %v2399 = vunpack.c.l.b16 %v2316
    %v2400 = vunpack.c.h.b16 %v2316
    %v2401 = vunpack.c.l.b16 %v2317
    %v2402 = vunpack.c.h.b16 %v2317
    %v2403 = vunpack.c.l.b16 %v2318
    %v2404 = vunpack.c.h.b16 %v2318
    %v2405 = vunpack.c.l.b16 %v2319
    %v2406 = vunpack.c.h.b16 %v2319
    %v2407 = vunpack.c.l.b16 %v2320
    %v2408 = vunpack.c.h.b16 %v2320
    %v2409 = vunpack.c.l.b16 %v2321
    %v2410 = vunpack.c.h.b16 %v2321
    %v2411 = vunpack.c.l.b16 %v2322
    %v2412 = vunpack.c.h.b16 %v2322
    %v2413 = vunpack.c.l.b16 %v2323
    %v2414 = vunpack.c.h.b16 %v2323
    %v2415 = vunpack.c.l.b16 %v2324
    %v2416 = vunpack.c.h.b16 %v2324
    %v2417 = vunpack.c.l.b16 %v2325
    %v2418 = vunpack.c.h.b16 %v2325
    %v2419 = vunpack.c.l.b16 %v2326
    %v2420 = vunpack.c.h.b16 %v2326
    %v2421 = vunpack.c.l.b16 %v2327
    %v2422 = vunpack.c.h.b16 %v2327
    %v2423 = vunpack.c.l.b16 %v2328
    %v2424 = vunpack.c.h.b16 %v2328
    %v2425 = vunpack.c.l.b16 %v2329
    %v2426 = vunpack.c.h.b16 %v2329
    %v2427 = vunpack.c.l.b16 %v2330
    %v2428 = vunpack.c.h.b16 %v2330
    %v2429 = vunpack.c.l.b16 %v2331
    %v2430 = vunpack.c.h.b16 %v2331
    %v2431 = vunpack.c.l.b16 %v2332
    %v2432 = vunpack.c.h.b16 %v2332
    %v2433 = vunpack.c.l.b16 %v2333
    %v2434 = vunpack.c.h.b16 %v2333
    %v2435 = vunpack.c.l.b16 %v2334
    %v2436 = vunpack.c.h.b16 %v2334
    %v2437 = vunpack.c.l.b16 %v2335
    %v2438 = vunpack.c.h.b16 %v2335
    %v2439 = vunpack.c.l.b16 %v2336
    %v2440 = vunpack.c.h.b16 %v2336
    %v2441 = vunpack.c.l.b16 %v2337
    %v2442 = vunpack.c.h.b16 %v2337
    %v2443 = vunpack.c.l.b16 %v2338
    %v2444 = vunpack.c.h.b16 %v2338
    %v2445 = vunpack.c.l.b16 %v2339
    %v2446 = vunpack.c.h.b16 %v2339
    %v2447 = vunpack.c.l.b16 %v2340
    %v2448 = vunpack.c.h.b16 %v2340
    %v2449 = vpack.c.b16 %v2387, %v2385
    %v2450 = vpack.c.b16 %v2388, %v2386
    %v2451 = vpack.c.b16 %v2391, %v2389
    %v2452 = vpack.c.b16 %v2392, %v2390
    %v2453 = vpack.c.b16 %v2395, %v2393
    %v2454 = vpack.c.b16 %v2396, %v2394
    %v2455 = vpack.c.b16 %v2399, %v2397
    %v2456 = vpack.c.b16 %v2400, %v2398
    %v2457 = vpack.c.b16 %v2403, %v2401
    %v2458 = vpack.c.b16 %v2404, %v2402
    %v2459 = vpack.c.b16 %v2407, %v2405
    %v2460 = vpack.c.b16 %v2408, %v2406
    %v2461 = vpack.c.b16 %v2411, %v2409
    %v2462 = vpack.c.b16 %v2412, %v2410
    %v2463 = vpack.c.b16 %v2415, %v2413
    %v2464 = vpack.c.b16 %v2416, %v2414
    %v2465 = vpack.c.b16 %v2419, %v2417
    %v2466 = vpack.c.b16 %v2420, %v2418
    %v2467 = vpack.c.b16 %v2423, %v2421
    %v2468 = vpack.c.b16 %v2424, %v2422
    %v2469 = vpack.c.b16 %v2427, %v2425
    %v2470 = vpack.c.b16 %v2428, %v2426
    %v2471 = vpack.c.b16 %v2431, %v2429
    %v2472 = vpack.c.b16 %v2432, %v2430
    %v2473 = vpack.c.b16 %v2435, %v2433
    %v2474 = vpack.c.b16 %v2436, %v2434
    %v2475 = vpack.c.b16 %v2439, %v2437
    %v2476 = vpack.c.b16 %v2440, %v2438
    %v2477 = vpack.c.b16 %v2443, %v2441
    %v2478 = vpack.c.b16 %v2444, %v2442
    %v2479 = vpack.c.b16 %v2447, %v2445
    %v2480 = vpack.c.b16 %v2448, %v2446
    %2513 = vmatprep.subr.bf16.mxu0 %v2464
    %2514 = vmatpush1.bf16.msra.mxu0 %v2463
    %2515 = vmatprep.subr.bf16.mxu0 %v2462
    %2516 = vmatpush1.bf16.msra.mxu0 %v2461
    %2517 = vmatprep.subr.bf16.mxu0 %v2460
    %2518 = vmatpush1.bf16.msra.mxu0 %v2459
    %2519 = vmatprep.subr.bf16.mxu0 %v2458
    %2520 = vmatpush1.bf16.msra.mxu0 %v2457
    %2521 = vmatprep.subr.bf16.mxu0 %v2456
    %2522 = vmatpush1.bf16.msra.mxu0 %v2455
    %2523 = vmatprep.subr.bf16.mxu0 %v2454
    %2524 = vmatpush1.bf16.msra.mxu0 %v2453
    %2525 = vmatprep.subr.bf16.mxu0 %v2452
    %2526 = vmatpush1.bf16.msra.mxu0 %v2451
    %2527 = vmatprep.subr.bf16.mxu0 %v2450
    %2528 = vmatpush1.bf16.msra.mxu0 %v2449
    %2529 = vmatprep.subr.bf16.mxu0 %v2480
    %2530 = vmatpush2.bf16.msra.mxu0 %v2479
    %2531 = vmatprep.subr.bf16.mxu0 %v2478
    %2532 = vmatpush2.bf16.msra.mxu0 %v2477
    %2533 = vmatprep.subr.bf16.mxu0 %v2476
    %2534 = vmatpush2.bf16.msra.mxu0 %v2475
    %2535 = vmatprep.subr.bf16.mxu0 %v2474
    %2536 = vmatpush2.bf16.msra.mxu0 %v2473
    %2537 = vmatprep.subr.bf16.mxu0 %v2472
    %2538 = vmatpush2.bf16.msra.mxu0 %v2471
    %2539 = vmatprep.subr.bf16.mxu0 %v2470
    %2540 = vmatpush2.bf16.msra.mxu0 %v2469
    %2541 = vmatprep.subr.bf16.mxu0 %v2468
    %2542 = vmatpush2.bf16.msra.mxu0 %v2467
    %2543 = vmatprep.subr.bf16.mxu0 %v2466
    %2544 = vmatpush2.bf16.msra.mxu0 %v2465
    %2545 = vmatprep.mubr.bf16.mxu0 %v2308
    %2546 = vmatmul.mubr.bf16.gmra.mxu0 %v2307
    %v2547 = vpop.f32.mrf.mxu0
    %v2548 = vadd.f32 %v2346, %v2547
    %v2549 = vpop.f32.mrf.mxu0
    %v2550 = vadd.f32 %v2350, %v2549
    %v2551 = vpop.f32.mrf.mxu0
    %v2552 = vpop.f32.mrf.mxu0
    %2553 = vdwg.mxu0
    %vm2554 = vcmp.ge.f32.partialorder %v2548, 0.0
    %vm2555 = vcmp.ge.f32.partialorder %v2550, 0.0
    %v2556 = vmul.f32 %v2548, 0.01
    %v2557 = vmul.f32 %v2550, 0.01
    %v2558 = vsel %vm2554, %v2548, %v2556
    %v2559 = vsel %vm2555, %v2550, %v2557
    %v2560 = vpack.c.bf16 %v2558, %v2558
    %v2561 = vpack.c.bf16 %v2559, %v2559
    %v2562 = vld [vmem:[#allocation16] sm:$0xff]
    %v2563 = vld [vmem:[#allocation16 + $0x8] sm:$0xff]
    %v2564 = vld [vmem:[#allocation16 + $0x10] sm:$0xff]
    %v2565 = vld [vmem:[#allocation16 + $0x18] sm:$0xff]
    %v2566 = vld [vmem:[#allocation16 + $0x20] sm:$0xff]
    %v2567 = vld [vmem:[#allocation16 + $0x28] sm:$0xff]
    %v2568 = vld [vmem:[#allocation16 + $0x30] sm:$0xff]
    %v2569 = vld [vmem:[#allocation16 + $0x38] sm:$0xff]
    %v2570 = vld [vmem:[#allocation16 + $0x40] sm:$0xff]
    %v2571 = vld [vmem:[#allocation16 + $0x48] sm:$0xff]
    %v2572 = vld [vmem:[#allocation16 + $0x50] sm:$0xff]
    %v2573 = vld [vmem:[#allocation16 + $0x58] sm:$0xff]
    %v2574 = vld [vmem:[#allocation16 + $0x60] sm:$0xff]
    %v2575 = vld [vmem:[#allocation16 + $0x68] sm:$0xff]
    %v2576 = vld [vmem:[#allocation16 + $0x70] sm:$0xff]
    %v2577 = vld [vmem:[#allocation16 + $0x78] sm:$0xff]
    %v2578 = vld [vmem:[#allocation16 + $0x80] sm:$0xff]
    %v2579 = vld [vmem:[#allocation16 + $0x88] sm:$0xff]
    %v2580 = vld [vmem:[#allocation16 + $0x90] sm:$0xff]
    %v2581 = vld [vmem:[#allocation16 + $0x98] sm:$0xff]
    %v2582 = vld [vmem:[#allocation16 + $0xa0] sm:$0xff]
    %v2583 = vld [vmem:[#allocation16 + $0xa8] sm:$0xff]
    %v2584 = vld [vmem:[#allocation16 + $0xb0] sm:$0xff]
    %v2585 = vld [vmem:[#allocation16 + $0xb8] sm:$0xff]
    %v2586 = vld [vmem:[#allocation16 + $0xc0] sm:$0xff]
    %v2587 = vld [vmem:[#allocation16 + $0xc8] sm:$0xff]
    %v2588 = vld [vmem:[#allocation16 + $0xd0] sm:$0xff]
    %v2589 = vld [vmem:[#allocation16 + $0xd8] sm:$0xff]
    %v2590 = vld [vmem:[#allocation16 + $0xe0] sm:$0xff]
    %v2591 = vld [vmem:[#allocation16 + $0xe8] sm:$0xff]
    %v2592 = vld [vmem:[#allocation16 + $0xf0] sm:$0xff]
    %v2593 = vld [vmem:[#allocation16 + $0xf8] sm:$0xff]
    %v2594 = vld [vmem:[%s14] sm:$0x3]
    %v2596 = vlaneseq
    %v2597 = vshrl.u32 %v2596, 7
    %v2598 = vsub.s32 0, %v2597
    %v2599 = vrot.slane %v2594, %v2598
    %v2600 = vlaneseq
    %v2601 = vshrl.u32 %v2600, 7
    %v2602 = vsub.s32 1, %v2601
    %v2603 = vrot.slane %v2594, %v2602
    %v2638 = vunpack.c.l.b16 %v2562
    %v2639 = vunpack.c.h.b16 %v2562
    %v2640 = vunpack.c.l.b16 %v2563
    %v2641 = vunpack.c.h.b16 %v2563
    %v2642 = vunpack.c.l.b16 %v2564
    %v2643 = vunpack.c.h.b16 %v2564
    %v2644 = vunpack.c.l.b16 %v2565
    %v2645 = vunpack.c.h.b16 %v2565
    %v2646 = vunpack.c.l.b16 %v2566
    %v2647 = vunpack.c.h.b16 %v2566
    %v2648 = vunpack.c.l.b16 %v2567
    %v2649 = vunpack.c.h.b16 %v2567
    %v2650 = vunpack.c.l.b16 %v2568
    %v2651 = vunpack.c.h.b16 %v2568
    %v2652 = vunpack.c.l.b16 %v2569
    %v2653 = vunpack.c.h.b16 %v2569
    %v2654 = vunpack.c.l.b16 %v2570
    %v2655 = vunpack.c.h.b16 %v2570
    %v2656 = vunpack.c.l.b16 %v2571
    %v2657 = vunpack.c.h.b16 %v2571
    %v2658 = vunpack.c.l.b16 %v2572
    %v2659 = vunpack.c.h.b16 %v2572
    %v2660 = vunpack.c.l.b16 %v2573
    %v2661 = vunpack.c.h.b16 %v2573
    %v2662 = vunpack.c.l.b16 %v2574
    %v2663 = vunpack.c.h.b16 %v2574
    %v2664 = vunpack.c.l.b16 %v2575
    %v2665 = vunpack.c.h.b16 %v2575
    %v2666 = vunpack.c.l.b16 %v2576
    %v2667 = vunpack.c.h.b16 %v2576
    %v2668 = vunpack.c.l.b16 %v2577
    %v2669 = vunpack.c.h.b16 %v2577
    %v2670 = vunpack.c.l.b16 %v2578
    %v2671 = vunpack.c.h.b16 %v2578
    %v2672 = vunpack.c.l.b16 %v2579
    %v2673 = vunpack.c.h.b16 %v2579
    %v2674 = vunpack.c.l.b16 %v2580
    %v2675 = vunpack.c.h.b16 %v2580
    %v2676 = vunpack.c.l.b16 %v2581
    %v2677 = vunpack.c.h.b16 %v2581
    %v2678 = vunpack.c.l.b16 %v2582
    %v2679 = vunpack.c.h.b16 %v2582
    %v2680 = vunpack.c.l.b16 %v2583
    %v2681 = vunpack.c.h.b16 %v2583
    %v2682 = vunpack.c.l.b16 %v2584
    %v2683 = vunpack.c.h.b16 %v2584
    %v2684 = vunpack.c.l.b16 %v2585
    %v2685 = vunpack.c.h.b16 %v2585
    %v2686 = vunpack.c.l.b16 %v2586
    %v2687 = vunpack.c.h.b16 %v2586
    %v2688 = vunpack.c.l.b16 %v2587
    %v2689 = vunpack.c.h.b16 %v2587
    %v2690 = vunpack.c.l.b16 %v2588
    %v2691 = vunpack.c.h.b16 %v2588
    %v2692 = vunpack.c.l.b16 %v2589
    %v2693 = vunpack.c.h.b16 %v2589
    %v2694 = vunpack.c.l.b16 %v2590
    %v2695 = vunpack.c.h.b16 %v2590
    %v2696 = vunpack.c.l.b16 %v2591
    %v2697 = vunpack.c.h.b16 %v2591
    %v2698 = vunpack.c.l.b16 %v2592
    %v2699 = vunpack.c.h.b16 %v2592
    %v2700 = vunpack.c.l.b16 %v2593
    %v2701 = vunpack.c.h.b16 %v2593
    %v2702 = vpack.c.b16 %v2640, %v2638
    %v2703 = vpack.c.b16 %v2641, %v2639
    %v2704 = vpack.c.b16 %v2644, %v2642
    %v2705 = vpack.c.b16 %v2645, %v2643
    %v2706 = vpack.c.b16 %v2648, %v2646
    %v2707 = vpack.c.b16 %v2649, %v2647
    %v2708 = vpack.c.b16 %v2652, %v2650
    %v2709 = vpack.c.b16 %v2653, %v2651
    %v2710 = vpack.c.b16 %v2656, %v2654
    %v2711 = vpack.c.b16 %v2657, %v2655
    %v2712 = vpack.c.b16 %v2660, %v2658
    %v2713 = vpack.c.b16 %v2661, %v2659
    %v2714 = vpack.c.b16 %v2664, %v2662
    %v2715 = vpack.c.b16 %v2665, %v2663
    %v2716 = vpack.c.b16 %v2668, %v2666
    %v2717 = vpack.c.b16 %v2669, %v2667
    %v2718 = vpack.c.b16 %v2672, %v2670
    %v2719 = vpack.c.b16 %v2673, %v2671
    %v2720 = vpack.c.b16 %v2676, %v2674
    %v2721 = vpack.c.b16 %v2677, %v2675
    %v2722 = vpack.c.b16 %v2680, %v2678
    %v2723 = vpack.c.b16 %v2681, %v2679
    %v2724 = vpack.c.b16 %v2684, %v2682
    %v2725 = vpack.c.b16 %v2685, %v2683
    %v2726 = vpack.c.b16 %v2688, %v2686
    %v2727 = vpack.c.b16 %v2689, %v2687
    %v2728 = vpack.c.b16 %v2692, %v2690
    %v2729 = vpack.c.b16 %v2693, %v2691
    %v2730 = vpack.c.b16 %v2696, %v2694
    %v2731 = vpack.c.b16 %v2697, %v2695
    %v2732 = vpack.c.b16 %v2700, %v2698
    %v2733 = vpack.c.b16 %v2701, %v2699
    %2766 = vmatprep.subr.bf16.mxu0 %v2717
    %2767 = vmatpush1.bf16.msra.mxu0 %v2716
    %2768 = vmatprep.subr.bf16.mxu0 %v2715
    %2769 = vmatpush1.bf16.msra.mxu0 %v2714
    %2770 = vmatprep.subr.bf16.mxu0 %v2713
    %2771 = vmatpush1.bf16.msra.mxu0 %v2712
    %2772 = vmatprep.subr.bf16.mxu0 %v2711
    %2773 = vmatpush1.bf16.msra.mxu0 %v2710
    %2774 = vmatprep.subr.bf16.mxu0 %v2709
    %2775 = vmatpush1.bf16.msra.mxu0 %v2708
    %2776 = vmatprep.subr.bf16.mxu0 %v2707
    %2777 = vmatpush1.bf16.msra.mxu0 %v2706
    %2778 = vmatprep.subr.bf16.mxu0 %v2705
    %2779 = vmatpush1.bf16.msra.mxu0 %v2704
    %2780 = vmatprep.subr.bf16.mxu0 %v2703
    %2781 = vmatpush1.bf16.msra.mxu0 %v2702
    %2782 = vmatprep.subr.bf16.mxu0 %v2733
    %2783 = vmatpush2.bf16.msra.mxu0 %v2732
    %2784 = vmatprep.subr.bf16.mxu0 %v2731
    %2785 = vmatpush2.bf16.msra.mxu0 %v2730
    %2786 = vmatprep.subr.bf16.mxu0 %v2729
    %2787 = vmatpush2.bf16.msra.mxu0 %v2728
    %2788 = vmatprep.subr.bf16.mxu0 %v2727
    %2789 = vmatpush2.bf16.msra.mxu0 %v2726
    %2790 = vmatprep.subr.bf16.mxu0 %v2725
    %2791 = vmatpush2.bf16.msra.mxu0 %v2724
    %2792 = vmatprep.subr.bf16.mxu0 %v2723
    %2793 = vmatpush2.bf16.msra.mxu0 %v2722
    %2794 = vmatprep.subr.bf16.mxu0 %v2721
    %2795 = vmatpush2.bf16.msra.mxu0 %v2720
    %2796 = vmatprep.subr.bf16.mxu0 %v2719
    %2797 = vmatpush2.bf16.msra.mxu0 %v2718
    %2798 = vmatprep.mubr.bf16.mxu0 %v2561
    %2799 = vmatmul.mubr.bf16.gmra.mxu0 %v2560
    %v2800 = vpop.f32.mrf.mxu0
    %v2801 = vadd.f32 %v2599, %v2800
    %v2802 = vpop.f32.mrf.mxu0
    %v2803 = vadd.f32 %v2603, %v2802
    %v2804 = vpop.f32.mrf.mxu0
    %v2805 = vpop.f32.mrf.mxu0
    %2806 = vdwg.mxu0
    %v2807 = vmax.f32 %v2801, %v2803
    %2808 = vmax.xlane.f32.xlu0 %v2807
    %v2809 = vpop.xlane.xlu0 %2808
    %v2810 = vsub.f32 %v2801, %v2809
    %v2811 = vsub.f32 %v2803, %v2809
    %v2812 = vmul.f32 %v2810, 1.442695
    %v2813 = vpow.pop %v2812
    %v2814 = vmul.f32 %v2811, 1.442695
    %v2815 = vpow.pop %v2814
    %v2816 = vadd.f32 %v2813, %v2815
    %2817 = vadd.xlane.f32.xlu0 %v2816
    %v2818 = vpop.xlane.xlu0 %2817
    %v2819 = vrcp.pop %v2818
    %v2820 = vmul.f32 1.0, %v2819
    %v2821 = vmul.f32 %v2813, %v2820
    %v2822 = vmul.f32 %v2815, %v2820
    %2823 = vst [vmem:[#allocation19] sm:$0xff] %v2821
    %2824 = vst [vmem:[#allocation19 + $0x8] sm:$0xff] %v2822
    %v2825 = vlog2.pop %v2818
    %v2826 = vmul.f32 %v2825, 0.6931472
    %v2827 = vsub.f32 %v2810, %v2826
    %v2828 = vsub.f32 %v2811, %v2826
    %2829 = vst [vmem:[#allocation20] sm:$0xff] %v2827
    %2830 = vst [vmem:[#allocation20 + $0x8] sm:$0xff] %v2828
    %v2831 = vld [vmem:[#allocation17] sm:$0xf]
    %v2832 = vld [vmem:[#allocation17 + $0x4] sm:$0xf]
    %v2833 = vld [vmem:[#allocation17 + $0x8] sm:$0xf]
    %v2834 = vld [vmem:[#allocation17 + $0xc] sm:$0xf]
    %v2835 = vld [vmem:[#allocation17 + $0x10] sm:$0xf]
    %v2836 = vld [vmem:[#allocation17 + $0x14] sm:$0xf]
    %v2837 = vld [vmem:[#allocation17 + $0x18] sm:$0xf]
    %v2838 = vld [vmem:[#allocation17 + $0x1c] sm:$0xf]
    %v2839 = vld [vmem:[#allocation17 + $0x20] sm:$0xf]
    %v2840 = vld [vmem:[#allocation17 + $0x24] sm:$0xf]
    %v2841 = vld [vmem:[#allocation17 + $0x28] sm:$0xf]
    %v2842 = vld [vmem:[#allocation17 + $0x2c] sm:$0xf]
    %v2843 = vld [vmem:[#allocation17 + $0x30] sm:$0xf]
    %v2844 = vld [vmem:[#allocation17 + $0x34] sm:$0xf]
    %v2845 = vld [vmem:[#allocation17 + $0x38] sm:$0xf]
    %v2846 = vld [vmem:[#allocation17 + $0x3c] sm:$0xf]
    %v2847 = vld [vmem:[#allocation17 + $0x40] sm:$0xf]
    %v2848 = vld [vmem:[#allocation17 + $0x44] sm:$0xf]
    %v2849 = vld [vmem:[#allocation17 + $0x48] sm:$0xf]
    %v2850 = vld [vmem:[#allocation17 + $0x4c] sm:$0xf]
    %v2851 = vld [vmem:[#allocation17 + $0x50] sm:$0xf]
    %v2852 = vld [vmem:[#allocation17 + $0x54] sm:$0xf]
    %v2853 = vld [vmem:[#allocation17 + $0x58] sm:$0xf]
    %v2854 = vld [vmem:[#allocation17 + $0x5c] sm:$0xf]
    %v2855 = vld [vmem:[#allocation17 + $0x60] sm:$0xf]
    %v2856 = vld [vmem:[#allocation17 + $0x64] sm:$0xf]
    %v2857 = vld [vmem:[#allocation17 + $0x68] sm:$0xf]
    %v2858 = vld [vmem:[#allocation17 + $0x6c] sm:$0xf]
    %v2859 = vld [vmem:[#allocation17 + $0x70] sm:$0xf]
    %v2860 = vld [vmem:[#allocation17 + $0x74] sm:$0xf]
    %v2861 = vld [vmem:[#allocation17 + $0x78] sm:$0xf]
    %v2862 = vld [vmem:[#allocation17 + $0x7c] sm:$0xf]
    %v2863 = vld [vmem:[%s16] sm:$0x1]
    %v2865 = vlaneseq
    %v2866 = vshrl.u32 %v2865, 7
    %v2867 = vsub.s32 0, %v2866
    %v2868 = vrot.slane %v2863, %v2867
    %v2902 = vunpack.c.l.b16 %v2831
    %v2903 = vunpack.c.l.b16 %v2832
    %v2904 = vunpack.c.l.b16 %v2833
    %v2905 = vunpack.c.l.b16 %v2834
    %v2906 = vunpack.c.l.b16 %v2835
    %v2907 = vunpack.c.l.b16 %v2836
    %v2908 = vunpack.c.l.b16 %v2837
    %v2909 = vunpack.c.l.b16 %v2838
    %v2910 = vunpack.c.l.b16 %v2839
    %v2911 = vunpack.c.l.b16 %v2840
    %v2912 = vunpack.c.l.b16 %v2841
    %v2913 = vunpack.c.l.b16 %v2842
    %v2914 = vunpack.c.l.b16 %v2843
    %v2915 = vunpack.c.l.b16 %v2844
    %v2916 = vunpack.c.l.b16 %v2845
    %v2917 = vunpack.c.l.b16 %v2846
    %v2918 = vunpack.c.l.b16 %v2847
    %v2919 = vunpack.c.l.b16 %v2848
    %v2920 = vunpack.c.l.b16 %v2849
    %v2921 = vunpack.c.l.b16 %v2850
    %v2922 = vunpack.c.l.b16 %v2851
    %v2923 = vunpack.c.l.b16 %v2852
    %v2924 = vunpack.c.l.b16 %v2853
    %v2925 = vunpack.c.l.b16 %v2854
    %v2926 = vunpack.c.l.b16 %v2855
    %v2927 = vunpack.c.l.b16 %v2856
    %v2928 = vunpack.c.l.b16 %v2857
    %v2929 = vunpack.c.l.b16 %v2858
    %v2930 = vunpack.c.l.b16 %v2859
    %v2931 = vunpack.c.l.b16 %v2860
    %v2932 = vunpack.c.l.b16 %v2861
    %v2933 = vunpack.c.l.b16 %v2862
    %v2934 = vpack.c.b16 %v2903, %v2902
    %v2935 = vpack.c.b16 %v2905, %v2904
    %v2936 = vpack.c.b16 %v2907, %v2906
    %v2937 = vpack.c.b16 %v2909, %v2908
    %v2938 = vpack.c.b16 %v2911, %v2910
    %v2939 = vpack.c.b16 %v2913, %v2912
    %v2940 = vpack.c.b16 %v2915, %v2914
    %v2941 = vpack.c.b16 %v2917, %v2916
    %v2942 = vpack.c.b16 %v2919, %v2918
    %v2943 = vpack.c.b16 %v2921, %v2920
    %v2944 = vpack.c.b16 %v2923, %v2922
    %v2945 = vpack.c.b16 %v2925, %v2924
    %v2946 = vpack.c.b16 %v2927, %v2926
    %v2947 = vpack.c.b16 %v2929, %v2928
    %v2948 = vpack.c.b16 %v2931, %v2930
    %v2949 = vpack.c.b16 %v2933, %v2932
    %2966 = vmatprep.subr.bf16.mxu0 0
    %2967 = vmatpush1.bf16.msra.mxu0 %v2941
    %2968 = vmatprep.subr.bf16.mxu0 0
    %2969 = vmatpush1.bf16.msra.mxu0 %v2940
    %2970 = vmatprep.subr.bf16.mxu0 0
    %2971 = vmatpush1.bf16.msra.mxu0 %v2939
    %2972 = vmatprep.subr.bf16.mxu0 0
    %2973 = vmatpush1.bf16.msra.mxu0 %v2938
    %2974 = vmatprep.subr.bf16.mxu0 0
    %2975 = vmatpush1.bf16.msra.mxu0 %v2937
    %2976 = vmatprep.subr.bf16.mxu0 0
    %2977 = vmatpush1.bf16.msra.mxu0 %v2936
    %2978 = vmatprep.subr.bf16.mxu0 0
    %2979 = vmatpush1.bf16.msra.mxu0 %v2935
    %2980 = vmatprep.subr.bf16.mxu0 0
    %2981 = vmatpush1.bf16.msra.mxu0 %v2934
    %2982 = vmatprep.subr.bf16.mxu0 0
    %2983 = vmatpush2.bf16.msra.mxu0 %v2949
    %2984 = vmatprep.subr.bf16.mxu0 0
    %2985 = vmatpush2.bf16.msra.mxu0 %v2948
    %2986 = vmatprep.subr.bf16.mxu0 0
    %2987 = vmatpush2.bf16.msra.mxu0 %v2947
    %2988 = vmatprep.subr.bf16.mxu0 0
    %2989 = vmatpush2.bf16.msra.mxu0 %v2946
    %2990 = vmatprep.subr.bf16.mxu0 0
    %2991 = vmatpush2.bf16.msra.mxu0 %v2945
    %2992 = vmatprep.subr.bf16.mxu0 0
    %2993 = vmatpush2.bf16.msra.mxu0 %v2944
    %2994 = vmatprep.subr.bf16.mxu0 0
    %2995 = vmatpush2.bf16.msra.mxu0 %v2943
    %2996 = vmatprep.subr.bf16.mxu0 0
    %2997 = vmatpush2.bf16.msra.mxu0 %v2942
    %2998 = vmatprep.mubr.bf16.mxu0 %v2308
    %2999 = vmatmul.mubr.bf16.gmra.mxu0 %v2307
    %v3000 = vpop.f32.mrf.mxu0
    %v3001 = vadd.f32 %v2868, %v3000
    %v3002 = vpop.f32.mrf.mxu0
    %v3003 = vpop.f32.mrf.mxu0
    %v3004 = vpop.f32.mrf.mxu0
    %3005 = vdwg.mxu0
    %3006 = vst [vmem:[#allocation22] sm:$0xff] %v3001
    // Predicated region
    $region110: #{tpu_custom_call.1} parent=1 // pred_check
      _
    $region111: #{tpu_custom_call.1} parent=1 // pred_check_branch
      %3008 = sbr.rel (0) target = $region113
    $region112: #{tpu_custom_call.1} parent=1 // pred_region
      %s3010 = ssub.s32 256, 256
      %3011 = vsyncadd [#allocation4], %s3010
      %s3013 = sshll.u32 [#allocation19], 4
      %s3014 = int_to_ptr.vmem [resolvable:$true] %s3013
      %3016 = dma.vmem_to_hbm [thread:$0]  %s3014, 256, %s17, [#allocation4]
    $region113: #{tpu_custom_call.1} parent=1 // pred_fallthru
      _
    // Predicated region
    $region114: #{tpu_custom_call.1} parent=1 // pred_check
      _
    $region115: #{tpu_custom_call.1} parent=1 // pred_check_branch
      %3018 = sbr.rel (0) target = $region117
    $region116: #{tpu_custom_call.1} parent=1 // pred_region
      %s3020 = ssub.s32 256, 256
      %3021 = vsyncadd [#allocation21], %s3020
      %s3023 = sshll.u32 [#allocation20], 4
      %s3024 = int_to_ptr.vmem [resolvable:$true] %s3023
      %3026 = dma.vmem_to_hbm [thread:$0]  %s3024, 256, %s18, [#allocation21]
    $region117: #{tpu_custom_call.1} parent=1 // pred_fallthru
      _
    // Predicated region
    $region118: #{tpu_custom_call.1} parent=1 // pred_check
      _
    $region119: #{tpu_custom_call.1} parent=1 // pred_check_branch
      %3028 = sbr.rel (0) target = $region121
    $region120: #{tpu_custom_call.1} parent=1 // pred_region
      %s3030 = ssub.s32 128, 128
      %3031 = vsyncadd [#allocation21], %s3030
      %s3033 = sshll.u32 [#allocation22], 4
      %s3034 = int_to_ptr.vmem [resolvable:$true] %s3033
      %3036 = dma.vmem_to_hbm [thread:$0]  %s3034, 128, %s19, [#allocation21]
    $region121: #{tpu_custom_call.1} parent=1 // pred_fallthru
      _
    // Predicated region
    $region122: #{tpu_custom_call.1} parent=1 // pred_check
      _
    $region123: #{tpu_custom_call.1} parent=1 // pred_check_branch
      %3038 = sbr.rel (0) target = $region125
    $region124: #{tpu_custom_call.1} parent=1 // pred_region
      %3039 = dma.done [#allocation4], 256
    $region125: #{tpu_custom_call.1} parent=1 // pred_fallthru
      _
    // Predicated region
    $region126: #{tpu_custom_call.1} parent=1 // pred_check
      _
    $region127: #{tpu_custom_call.1} parent=1 // pred_check_branch
      %3041 = sbr.rel (0) target = $region129
    $region128: #{tpu_custom_call.1} parent=1 // pred_region
      %3042 = dma.done [#allocation21], 256
    $region129: #{tpu_custom_call.1} parent=1 // pred_fallthru
      _
    // Predicated region
    $region130: #{tpu_custom_call.1} parent=1 // pred_check
      _
    $region131: #{tpu_custom_call.1} parent=1 // pred_check_branch
      %3044 = sbr.rel (0) target = $region133
    $region132: #{tpu_custom_call.1} parent=1 // pred_region
      %3045 = dma.done [#allocation21], 128
    $region133: #{tpu_custom_call.1} parent=1 // pred_fallthru
      _
    %3046 = vsyncpa [#allocation3], 1
    %3047 = vsyncpa [#allocation6], 1
    %3048 = vsyncpa [#allocation9], 1
    %3049 = vsyncpa [#allocation12], 1
    %3050 = vsyncpa [#allocation15], 1
    %3051 = vsyncpa [#allocation18], 1
    %3052 = vsyncpa [#allocation4], 1
    %3053 = vsyncpa [#allocation21], 1

</llo_original>
